<compile_context>
chip_gen: v5e
topology: v5e:2x2
jax: 0.10.0
libtpu: 0.0.40
codegen_flags: <defaults>
</compile_context>

<pallas_src>
import functools

import jax
import jax.numpy as jnp
from jax.experimental import pallas as pl
from jax.experimental.pallas import tpu as pltpu

VMEM_SPEC = pl.BlockSpec(memory_space=pltpu.MemorySpace.VMEM)


# ------------------------------ fused Pallas kernel ------------------------------

def fused_gnn_kernel(ids_ref, table_ref, pew_ref, peb_ref,
                     src_ref, dst_ref, dstT_ref, valid_ref, ea_ref, sel_ref,
                     *rest, heads, n_layers):
    """Whole GNN14 forward in a single kernel (single program, full-array VMEM blocks)."""
    out_ref = rest[-1]
    layer_refs = rest[:-1]          # n_layers groups of (wcat, bcat, wecat, attbd, bias)

    # --- embedding lookup: one-hot @ table (N*VOCAB is tiny, so the MXU matmul path is fine) ---
    ids = ids_ref[...]                                        # (N, 1) int32
    n = ids.shape[0]
    vocab = table_ref.shape[0]
    iota = jax.lax.broadcasted_iota(jnp.int32, (n, vocab), 1)
    onehot = (ids == iota).astype(jnp.float32)
    x = jnp.dot(onehot, table_ref[...], preferred_element_type=jnp.float32)   # (N, D)

    # --- graph structure: DMA'd ONCE for all layers (bf16 storage, cast once) ---
    src = src_ref[...].astype(jnp.float32)    # (E, N) one-hot of source node per edge
    dst = dst_ref[...].astype(jnp.float32)    # (E, N) one-hot of target node per edge
    dstT = dstT_ref[...].astype(jnp.float32)  # (N, E) single shared copy for denom/scatter matmuls
    valid = valid_ref[...]                    # (E, 1) 1.0 real edge / 0.0 padding

    # --- project_edges Linear; ReLU on edge_attr between layers ---
    # TODO(synk): construct_my_layer source unavailable; assumed GATv2Conv-style node update
    # with edge_attr returned unchanged (so conv2/conv3 see relu(projected edge_attr)).
    ea1 = jnp.dot(ea_ref[...], pew_ref[...], preferred_element_type=jnp.float32) + peb_ref[...]
    ea_relu = jnp.maximum(ea1, 0.0)

    inv_heads = 1.0 / float(heads)
    for l in range(n_layers):
        wcat_ref, bcat_ref, wecat_ref, attbd_ref, bias_ref = layer_refs[5 * l:5 * l + 5]
        c = bias_ref.shape[-1]
        hc = heads * c
        ea_l = ea1 if l == 0 else ea_relu

        # heads stacked on lanes: ONE lane-dense projection matmul covers Wl & Wr for all heads
        xfull = jnp.dot(x, wcat_ref[...], preferred_element_type=jnp.float32) + bcat_ref[...]
        xl_all = xfull[:, :hc]                 # (N, H*C)  Wl x + bl, heads concatenated
        xr_all = xfull[:, hc:]                 # (N, H*C)  Wr x + br

        # edge-list gathers realized as one-hot matmuls (MXU), both heads at once
        xj = jnp.dot(src, xl_all, preferred_element_type=jnp.float32)           # (E, H*C)
        xi = jnp.dot(dst, xr_all, preferred_element_type=jnp.float32)           # (E, H*C)
        ep = jnp.dot(ea_l, wecat_ref[...], preferred_element_type=jnp.float32)  # (E, H*C)

        s = xi + xj + ep
        s = jnp.where(s > 0, s, 0.2 * s)                                         # LeakyReLU(0.2)
        # attention dot-products for all heads via one block-diagonal matmul
        logits = jnp.dot(s, attbd_ref[...], preferred_element_type=jnp.float32)  # (E, H)

        acc = None
        for h in range(heads):
            lg = logits[:, h:h + 1]                                              # (E, 1)
            # per-target-node max (kept as masked reduce for numerical stability)
            masked = jnp.where(dst > 0, lg, -1e30)                               # (E, N)
            pmax = jnp.max(masked, axis=0, keepdims=True)                        # (1, N)
            emax = jnp.sum(dst * pmax, axis=-1, keepdims=True)                   # (E, 1)
            w = jnp.exp(lg - emax) * valid                                       # (E, 1)
            # segment-sum denominator + gather-back as incidence matmuls (MXU)
            nden = jnp.dot(dstT, w, preferred_element_type=jnp.float32)          # (N, 1)
            eden = jnp.dot(dst, nden, preferred_element_type=jnp.float32)        # (E, 1)
            # EUP approximate reciprocal instead of VPU divide
            alpha = w * pl.reciprocal(eden + (1.0 - valid), approx=True)         # (E, 1)
            # weighted scatter back to nodes (MXU)
            o_h = jnp.dot(dstT, alpha * xj[:, h * c:(h + 1) * c],
                          preferred_element_type=jnp.float32)                    # (N, C)
            acc = o_h if acc is None else acc + o_h

        x = acc * inv_heads + bias_ref[...]    # concat=False -> mean over heads, + bias
        if l < n_layers - 1:
            x = jnp.maximum(x, 0.0)            # ReLU between conv layers

    # --- global_master_pool: selection matmul picks the master node of each graph ---
    out_ref[...] = jnp.dot(sel_ref[...].astype(jnp.float32), x,
                           preferred_element_type=jnp.float32)


# ----------------------------------- wrapper -----------------------------------

def stack_gatv2_params(p):
    """Stack per-head GATv2 weights onto the lane axis for the fused kernel."""
    wl, bl, wr, br, we, att, bias = p
    h_, _, c = wl.shape
    wcat = jnp.concatenate([wl[h] for h in range(h_)] + [wr[h] for h in range(h_)], axis=1)
    bcat = jnp.concatenate([bl[h] for h in range(h_)] + [br[h] for h in range(h_)], axis=1)
    wecat = jnp.concatenate([we[h] for h in range(h_)], axis=1)
    attbd = jnp.zeros((h_ * c, h_), jnp.float32)
    for h in range(h_):
        attbd = attbd.at[h * c:(h + 1) * c, h].set(att[h, 0])
    return (wcat, bcat, wecat, attbd, bias)


def gnn14_forward(tokens, table, pe_w, pe_b, stacked_layers, graph, sel, heads):
    src_oh, dst_oh, dstT, valid, ea = graph
    n = tokens.shape[0]
    b = sel.shape[0]
    out_dim = stacked_layers[-1][4].shape[-1]
    flat = [p for layer in stacked_layers for p in layer]
    kernel = functools.partial(fused_gnn_kernel, heads=heads, n_layers=len(stacked_layers))
    return pl.pallas_call(
        kernel,
        out_shape=jax.ShapeDtypeStruct((b, out_dim), jnp.float32),
        in_specs=[VMEM_SPEC] * (10 + len(flat)),
        out_specs=VMEM_SPEC,
    )(tokens.reshape(n, 1).astype(jnp.int32), table, pe_w, pe_b,
      src_oh, dst_oh, dstT, valid, ea, sel, *flat)


# ------------------------------ pure-JAX reference ------------------------------

def gatv2_ref(x, params, src_idx, dst_idx, ea, n_nodes, apply_relu):
    wl, bl, wr, br, we, att, bias = params
    heads = wl.shape[0]
    outs = 0.0
    for h in range(heads):
        xl = x @ wl[h] + bl[h]
        xr = x @ wr[h] + br[h]
        xj = xl[src_idx]
        xi = xr[dst_idx]
        ep = ea @ we[h]
        s = xi + xj + ep
        s = jnp.where(s > 0, s, 0.2 * s)
        logits = jnp.sum(s * att[h], axis=-1)
        m = jax.ops.segment_max(logits, dst_idx, num_segments=n_nodes)
        w = jnp.exp(logits - m[dst_idx])
        den = jax.ops.segment_sum(w, dst_idx, num_segments=n_nodes)
        alpha = w / den[dst_idx]
        outs = outs + jax.ops.segment_sum(alpha[:, None] * xj, dst_idx, num_segments=n_nodes)
    out = outs / heads + bias
    return jnp.maximum(out, 0.0) if apply_relu else out


# ------------------------------------- main -------------------------------------

if __name__ == "__main__":
    key = jax.random.PRNGKey(0)
    N, B = 16, 2                 # 2 graphs of 8 nodes each; batch = [0]*8 + [1]*8
    IN_DIM = 32                  # synthetic CLIP token-embedding dim == conv1 in_dim
    MIDDLE_DIM = 32
    OUT_DIM = 32
    EDGE_DIM = 8
    EDGE_PROJ_DIM = 16
    HEADS = 2
    VOCAB = 32 + 4               # module appends 4 extra embedding rows

    ks = jax.random.split(key, 10)

    # directed edges (no self loops), 10 per graph
    edges = []
    for g in range(B):
        base = g * 8
        for i in range(8):
            edges.append((base + i, base + (i + 1) % 8))
        edges.append((base + 0, base + 3))
        edges.append((base + 2, base + 5))
    src_idx = jnp.array([e[0] for e in edges], dtype=jnp.int32)
    dst_idx = jnp.array([e[1] for e in edges], dtype=jnp.int32)
    E_orig = len(edges)
    edge_attr = jax.random.normal(ks[0], (E_orig, EDGE_DIM), jnp.float32)

    # GATv2Conv adds self-loops with fill_value='mean' (mean of incoming raw edge attrs per
    # node; projection is affine so this equals the mean of projected attrs here).
    counts = jnp.zeros((N,), jnp.float32).at[dst_idx].add(1.0)
    sums = jnp.zeros((N, EDGE_DIM), jnp.float32).at[dst_idx].add(edge_attr)
    loop_attr = sums / jnp.maximum(counts, 1.0)[:, None]
    src_all = jnp.concatenate([src_idx, jnp.arange(N, dtype=jnp.int32)])
    dst_all = jnp.concatenate([dst_idx, jnp.arange(N, dtype=jnp.int32)])
    ea_all = jnp.concatenate([edge_attr, loop_attr], axis=0)
    E_tot = E_orig + N
    E_pad = ((E_tot + 7) // 8) * 8

    src_oh = jnp.zeros((E_pad, N), jnp.float32).at[jnp.arange(E_tot), src_all].set(1.0)
    dst_oh = jnp.zeros((E_pad, N), jnp.float32).at[jnp.arange(E_tot), dst_all].set(1.0)
    ea_pad = jnp.zeros((E_pad, EDGE_DIM), jnp.float32).at[:E_tot].set(ea_all)
    valid = (jnp.arange(E_pad) < E_tot).astype(jnp.float32)[:, None]
    # one-hot incidence matrices stored in bf16 (exact 0/1) -> half the DMA bytes
    graph = (src_oh.astype(jnp.bfloat16), dst_oh.astype(jnp.bfloat16),
             dst_oh.T.astype(jnp.bfloat16), valid, ea_pad)

    # node tokens + deterministic synthetic embedding table
    # TODO(synk): tokens_to_embeddings_batched / open_clip weights unavailable; assume one
    # token id per node and a synthetic (VOCAB, IN_DIM) table standing in for CLIP (+4 rows).
    tokens = jax.random.randint(ks[1], (N,), 0, VOCAB, dtype=jnp.int32)
    table = jax.random.normal(ks[2], (VOCAB, IN_DIM), jnp.float32) * 0.1

    # project_edges Linear
    pe_w = jax.random.normal(ks[3], (EDGE_DIM, EDGE_PROJ_DIM), jnp.float32) \
        * (2.0 / (EDGE_DIM + EDGE_PROJ_DIM)) ** 0.5
    pe_b = jax.random.normal(ks[4], (1, EDGE_PROJ_DIM), jnp.float32) * 0.05

    def init_gatv2(k, din, dout, edge_in):
        kk = jax.random.split(k, 7)
        sc_w = (2.0 / (din + dout)) ** 0.5
        sc_e = (2.0 / (edge_in + dout)) ** 0.5
        wl = jax.random.normal(kk[0], (HEADS, din, dout), jnp.float32) * sc_w
        bl = jax.random.normal(kk[1], (HEADS, 1, dout), jnp.float32) * 0.05
        wr = jax.random.normal(kk[2], (HEADS, din, dout), jnp.float32) * sc_w
        br = jax.random.normal(kk[3], (HEADS, 1, dout), jnp.float32) * 0.05
        we = jax.random.normal(kk[4], (HEADS, edge_in, dout), jnp.float32) * sc_e
        att = jax.random.normal(kk[5], (HEADS, 1, dout), jnp.float32) * (1.0 / dout ** 0.5)
        bias = jax.random.normal(kk[6], (1, dout), jnp.float32) * 0.05
        return (wl, bl, wr, br, we, att, bias)

    conv_params = (
        init_gatv2(ks[5], IN_DIM, MIDDLE_DIM, EDGE_PROJ_DIM),
        init_gatv2(ks[6], MIDDLE_DIM, MIDDLE_DIM, EDGE_PROJ_DIM),
        init_gatv2(ks[7], MIDDLE_DIM, OUT_DIM, EDGE_PROJ_DIM),
    )
    stacked = tuple(stack_gatv2_params(p) for p in conv_params)

    # TODO(synk): global_master_pool / dropout_node_keep_master_nodes sources unavailable;
    # dropout is identity at inference and the master node is assumed to be the last node
    # of each graph.
    master_idx = jnp.array([7, 15], dtype=jnp.int32)
    sel = jnp.zeros((B, N), jnp.float32).at[jnp.arange(B), master_idx].set(1.0)
    sel = sel.astype(jnp.bfloat16)

    out = gnn14_forward(tokens, table, pe_w, pe_b, stacked, graph, sel, HEADS)
    out = jax.block_until_ready(out)

    # independent pure-JAX reference (segment-softmax path, per-head weights)
    x0 = table[tokens]
    ea_proj = ea_all @ pe_w + pe_b
    h = gatv2_ref(x0, conv_params[0], src_all, dst_all, ea_proj, N, True)
    ea_proj_r = jnp.maximum(ea_proj, 0.0)
    h = gatv2_ref(h, conv_params[1], src_all, dst_all, ea_proj_r, N, True)
    h = gatv2_ref(h, conv_params[2], src_all, dst_all, ea_proj_r, N, False)
    ref = h[master_idx]

    assert out.shape == (B, OUT_DIM)
    err = float(jnp.max(jnp.abs(out - ref)))
    assert bool(jnp.allclose(out, ref, atol=2e-3, rtol=2e-3)), err
    print("KERNEL_OK")
</pallas_src>

<mosaic_0001>
module attributes {stable_mosaic.version = 11 : i64} {
  func.func @fused_gnn_kernel(%arg0: memref<16x1xi32, #tpu.memory_space<vmem>>, %arg1: memref<36x32xf32, #tpu.memory_space<vmem>>, %arg2: memref<8x16xf32, #tpu.memory_space<vmem>>, %arg3: memref<1x16xf32, #tpu.memory_space<vmem>>, %arg4: memref<40x16xbf16, #tpu.memory_space<vmem>>, %arg5: memref<40x16xbf16, #tpu.memory_space<vmem>>, %arg6: memref<16x40xbf16, #tpu.memory_space<vmem>>, %arg7: memref<40x1xf32, #tpu.memory_space<vmem>>, %arg8: memref<40x8xf32, #tpu.memory_space<vmem>>, %arg9: memref<2x16xbf16, #tpu.memory_space<vmem>>, %arg10: memref<32x128xf32, #tpu.memory_space<vmem>>, %arg11: memref<1x128xf32, #tpu.memory_space<vmem>>, %arg12: memref<16x64xf32, #tpu.memory_space<vmem>>, %arg13: memref<64x2xf32, #tpu.memory_space<vmem>>, %arg14: memref<1x32xf32, #tpu.memory_space<vmem>>, %arg15: memref<32x128xf32, #tpu.memory_space<vmem>>, %arg16: memref<1x128xf32, #tpu.memory_space<vmem>>, %arg17: memref<16x64xf32, #tpu.memory_space<vmem>>, %arg18: memref<64x2xf32, #tpu.memory_space<vmem>>, %arg19: memref<1x32xf32, #tpu.memory_space<vmem>>, %arg20: memref<32x128xf32, #tpu.memory_space<vmem>>, %arg21: memref<1x128xf32, #tpu.memory_space<vmem>>, %arg22: memref<16x64xf32, #tpu.memory_space<vmem>>, %arg23: memref<64x2xf32, #tpu.memory_space<vmem>>, %arg24: memref<1x32xf32, #tpu.memory_space<vmem>>, %arg25: memref<2x32xf32, #tpu.memory_space<vmem>>) attributes {dimension_semantics = [], scalar_prefetch = 0 : i64, scratch_operands = 0 : i64, tpu.core_type = #tpu.core_type<tc>} {
    %c0 = arith.constant 0 : index
    %c0_0 = arith.constant 0 : index
    %0 = vector.load %arg0[%c0, %c0_0] : memref<16x1xi32, #tpu.memory_space<vmem>>, vector<16x1xi32>
    %1 = tpu.iota {dimensions = array<i32: 1>} : vector<16x36xi32>
    %2 = vector.broadcast %0 : vector<16x1xi32> to vector<16x36xi32>
    %3 = arith.cmpi eq, %2, %1 : vector<16x36xi32>
    %4 = arith.extui %3 : vector<16x36xi1> to vector<16x36xi32>
    %5 = arith.sitofp %4 : vector<16x36xi32> to vector<16x36xf32>
    %c0_1 = arith.constant 0 : index
    %c0_2 = arith.constant 0 : index
    %6 = vector.load %arg1[%c0_1, %c0_2] : memref<36x32xf32, #tpu.memory_space<vmem>>, vector<36x32xf32>
    %cst = arith.constant dense<0.000000e+00> : vector<16x32xf32>
    %7 = tpu.matmul %5, %6, %cst {dimension_numbers = #tpu.dot_dimension_numbers<[1], [0], [0], [1], [0, 0, 1, 1], [], []>} : vector<16x36xf32>, vector<36x32xf32>, vector<16x32xf32> -> vector<16x32xf32>
    %c0_3 = arith.constant 0 : index
    %c0_4 = arith.constant 0 : index
    %8 = vector.load %arg4[%c0_3, %c0_4] : memref<40x16xbf16, #tpu.memory_space<vmem>>, vector<40x16xbf16>
    %9 = arith.extf %8 : vector<40x16xbf16> to vector<40x16xf32>
    %c0_5 = arith.constant 0 : index
    %c0_6 = arith.constant 0 : index
    %10 = vector.load %arg5[%c0_5, %c0_6] : memref<40x16xbf16, #tpu.memory_space<vmem>>, vector<40x16xbf16>
    %11 = arith.extf %10 : vector<40x16xbf16> to vector<40x16xf32>
    %c0_7 = arith.constant 0 : index
    %c0_8 = arith.constant 0 : index
    %12 = vector.load %arg6[%c0_7, %c0_8] : memref<16x40xbf16, #tpu.memory_space<vmem>>, vector<16x40xbf16>
    %13 = arith.extf %12 : vector<16x40xbf16> to vector<16x40xf32>
    %c0_9 = arith.constant 0 : index
    %c0_10 = arith.constant 0 : index
    %14 = vector.load %arg7[%c0_9, %c0_10] : memref<40x1xf32, #tpu.memory_space<vmem>>, vector<40x1xf32>
    %c0_11 = arith.constant 0 : index
    %c0_12 = arith.constant 0 : index
    %15 = vector.load %arg8[%c0_11, %c0_12] : memref<40x8xf32, #tpu.memory_space<vmem>>, vector<40x8xf32>
    %c0_13 = arith.constant 0 : index
    %c0_14 = arith.constant 0 : index
    %16 = vector.load %arg2[%c0_13, %c0_14] : memref<8x16xf32, #tpu.memory_space<vmem>>, vector<8x16xf32>
    %cst_15 = arith.constant dense<0.000000e+00> : vector<40x16xf32>
    %17 = tpu.matmul %15, %16, %cst_15 {dimension_numbers = #tpu.dot_dimension_numbers<[1], [0], [0], [1], [0, 0, 1, 1], [], []>} : vector<40x8xf32>, vector<8x16xf32>, vector<40x16xf32> -> vector<40x16xf32>
    %c0_16 = arith.constant 0 : index
    %c0_17 = arith.constant 0 : index
    %18 = vector.load %arg3[%c0_16, %c0_17] : memref<1x16xf32, #tpu.memory_space<vmem>>, vector<1x16xf32>
    %19 = vector.broadcast %18 : vector<1x16xf32> to vector<40x16xf32>
    %20 = arith.addf %17, %19 : vector<40x16xf32>
    %cst_18 = arith.constant 0.000000e+00 : f32
    %21 = vector.broadcast %cst_18 : f32 to vector<40x16xf32>
    %22 = arith.maximumf %20, %21 : vector<40x16xf32>
    %c0_19 = arith.constant 0 : index
    %c0_20 = arith.constant 0 : index
    %23 = vector.load %arg10[%c0_19, %c0_20] : memref<32x128xf32, #tpu.memory_space<vmem>>, vector<32x128xf32>
    %cst_21 = arith.constant dense<0.000000e+00> : vector<16x128xf32>
    %24 = tpu.matmul %7, %23, %cst_21 {dimension_numbers = #tpu.dot_dimension_numbers<[1], [0], [0], [1], [0, 0, 1, 1], [], []>} : vector<16x32xf32>, vector<32x128xf32>, vector<16x128xf32> -> vector<16x128xf32>
    %c0_22 = arith.constant 0 : index
    %c0_23 = arith.constant 0 : index
    %25 = vector.load %arg11[%c0_22, %c0_23] : memref<1x128xf32, #tpu.memory_space<vmem>>, vector<1x128xf32>
    %26 = vector.broadcast %25 : vector<1x128xf32> to vector<16x128xf32>
    %27 = arith.addf %24, %26 : vector<16x128xf32>
    %28 = vector.extract_strided_slice %27 {offsets = [0, 0], sizes = [16, 64], strides = [1, 1]} : vector<16x128xf32> to vector<16x64xf32>
    %29 = vector.extract_strided_slice %27 {offsets = [0, 64], sizes = [16, 64], strides = [1, 1]} : vector<16x128xf32> to vector<16x64xf32>
    %cst_24 = arith.constant dense<0.000000e+00> : vector<40x64xf32>
    %30 = tpu.matmul %9, %28, %cst_24 {dimension_numbers = #tpu.dot_dimension_numbers<[1], [0], [0], [1], [0, 0, 1, 1], [], []>} : vector<40x16xf32>, vector<16x64xf32>, vector<40x64xf32> -> vector<40x64xf32>
    %cst_25 = arith.constant dense<0.000000e+00> : vector<40x64xf32>
    %31 = tpu.matmul %11, %29, %cst_25 {dimension_numbers = #tpu.dot_dimension_numbers<[1], [0], [0], [1], [0, 0, 1, 1], [], []>} : vector<40x16xf32>, vector<16x64xf32>, vector<40x64xf32> -> vector<40x64xf32>
    %c0_26 = arith.constant 0 : index
    %c0_27 = arith.constant 0 : index
    %32 = vector.load %arg12[%c0_26, %c0_27] : memref<16x64xf32, #tpu.memory_space<vmem>>, vector<16x64xf32>
    %cst_28 = arith.constant dense<0.000000e+00> : vector<40x64xf32>
    %33 = tpu.matmul %20, %32, %cst_28 {dimension_numbers = #tpu.dot_dimension_numbers<[1], [0], [0], [1], [0, 0, 1, 1], [], []>} : vector<40x16xf32>, vector<16x64xf32>, vector<40x64xf32> -> vector<40x64xf32>
    %34 = arith.addf %31, %30 : vector<40x64xf32>
    %35 = arith.addf %34, %33 : vector<40x64xf32>
    %cst_29 = arith.constant 0.000000e+00 : f32
    %36 = vector.broadcast %cst_29 : f32 to vector<40x64xf32>
    %37 = arith.cmpf ogt, %35, %36 : vector<40x64xf32>
    %cst_30 = arith.constant 2.000000e-01 : f32
    %38 = vector.broadcast %cst_30 : f32 to vector<40x64xf32>
    %39 = arith.mulf %38, %35 : vector<40x64xf32>
    %40 = arith.select %37, %35, %39 : vector<40x64xi1>, vector<40x64xf32>
    %c0_31 = arith.constant 0 : index
    %c0_32 = arith.constant 0 : index
    %41 = vector.load %arg13[%c0_31, %c0_32] : memref<64x2xf32, #tpu.memory_space<vmem>>, vector<64x2xf32>
    %cst_33 = arith.constant dense<0.000000e+00> : vector<40x2xf32>
    %42 = tpu.matmul %40, %41, %cst_33 {dimension_numbers = #tpu.dot_dimension_numbers<[1], [0], [0], [1], [0, 0, 1, 1], [], []>} : vector<40x64xf32>, vector<64x2xf32>, vector<40x2xf32> -> vector<40x2xf32>
    %43 = vector.extract_strided_slice %42 {offsets = [0, 0], sizes = [40, 1], strides = [1, 1]} : vector<40x2xf32> to vector<40x1xf32>
    %cst_34 = arith.constant 0.000000e+00 : f32
    %44 = vector.broadcast %cst_34 : f32 to vector<40x16xf32>
    %45 = arith.cmpf ogt, %11, %44 : vector<40x16xf32>
    %cst_35 = arith.constant -1.000000e+30 : f32
    %46 = vector.shape_cast %43 : vector<40x1xf32> to vector<40x1xf32>
    %47 = vector.broadcast %46 : vector<40x1xf32> to vector<40x16xf32>
    %48 = vector.broadcast %cst_35 : f32 to vector<40x16xf32>
    %49 = arith.select %45, %47, %48 : vector<40x16xi1>, vector<40x16xf32>
    %cst_36 = arith.constant dense<0xFF800000> : vector<16xf32>
    %50 = vector.multi_reduction <maximumf>, %49, %cst_36 [0] : vector<40x16xf32> to vector<16xf32>
    %51 = vector.shape_cast %50 : vector<16xf32> to vector<1x16xf32>
    %52 = vector.broadcast %51 : vector<1x16xf32> to vector<40x16xf32>
    %53 = arith.mulf %11, %52 : vector<40x16xf32>
    %cst_37 = arith.constant dense<0.000000e+00> : vector<40xf32>
    %54 = vector.multi_reduction <add>, %53, %cst_37 [1] : vector<40x16xf32> to vector<40xf32>
    %55 = vector.shape_cast %54 : vector<40xf32> to vector<40x1xf32>
    %56 = arith.subf %43, %55 : vector<40x1xf32>
    %57 = math.exp %56 : vector<40x1xf32>
    %58 = arith.mulf %57, %14 : vector<40x1xf32>
    %cst_38 = arith.constant dense<0.000000e+00> : vector<16x1xf32>
    %59 = tpu.matmul %13, %58, %cst_38 {dimension_numbers = #tpu.dot_dimension_numbers<[1], [0], [0], [1], [0, 0, 1, 1], [], []>} : vector<16x40xf32>, vector<40x1xf32>, vector<16x1xf32> -> vector<16x1xf32>
    %cst_39 = arith.constant dense<0.000000e+00> : vector<40x1xf32>
    %60 = tpu.matmul %11, %59, %cst_39 {dimension_numbers = #tpu.dot_dimension_numbers<[1], [0], [0], [1], [0, 0, 1, 1], [], []>} : vector<40x16xf32>, vector<16x1xf32>, vector<40x1xf32> -> vector<40x1xf32>
    %cst_40 = arith.constant 1.000000e+00 : f32
    %61 = vector.broadcast %cst_40 : f32 to vector<40x1xf32>
    %62 = arith.subf %61, %14 : vector<40x1xf32>
    %63 = arith.addf %60, %62 : vector<40x1xf32>
    %64 = tpu.reciprocal %63 {approx = true} : vector<40x1xf32> -> vector<40x1xf32>
    %65 = arith.mulf %58, %64 : vector<40x1xf32>
    %66 = vector.extract_strided_slice %30 {offsets = [0, 0], sizes = [40, 32], strides = [1, 1]} : vector<40x64xf32> to vector<40x32xf32>
    %67 = vector.broadcast %65 : vector<40x1xf32> to vector<40x32xf32>
    %68 = arith.mulf %67, %66 : vector<40x32xf32>
    %cst_41 = arith.constant dense<0.000000e+00> : vector<16x32xf32>
    %69 = tpu.matmul %13, %68, %cst_41 {dimension_numbers = #tpu.dot_dimension_numbers<[1], [0], [0], [1], [0, 0, 1, 1], [], []>} : vector<16x40xf32>, vector<40x32xf32>, vector<16x32xf32> -> vector<16x32xf32>
    %70 = vector.extract_strided_slice %42 {offsets = [0, 1], sizes = [40, 1], strides = [1, 1]} : vector<40x2xf32> to vector<40x1xf32>
    %cst_42 = arith.constant 0.000000e+00 : f32
    %71 = vector.broadcast %cst_42 : f32 to vector<40x16xf32>
    %72 = arith.cmpf ogt, %11, %71 : vector<40x16xf32>
    %cst_43 = arith.constant -1.000000e+30 : f32
    %73 = vector.shape_cast %70 : vector<40x1xf32> to vector<40x1xf32>
    %74 = vector.broadcast %73 : vector<40x1xf32> to vector<40x16xf32>
    %75 = vector.broadcast %cst_43 : f32 to vector<40x16xf32>
    %76 = arith.select %72, %74, %75 : vector<40x16xi1>, vector<40x16xf32>
    %cst_44 = arith.constant dense<0xFF800000> : vector<16xf32>
    %77 = vector.multi_reduction <maximumf>, %76, %cst_44 [0] : vector<40x16xf32> to vector<16xf32>
    %78 = vector.shape_cast %77 : vector<16xf32> to vector<1x16xf32>
    %79 = vector.broadcast %78 : vector<1x16xf32> to vector<40x16xf32>
    %80 = arith.mulf %11, %79 : vector<40x16xf32>
    %cst_45 = arith.constant dense<0.000000e+00> : vector<40xf32>
    %81 = vector.multi_reduction <add>, %80, %cst_45 [1] : vector<40x16xf32> to vector<40xf32>
    %82 = vector.shape_cast %81 : vector<40xf32> to vector<40x1xf32>
    %83 = arith.subf %70, %82 : vector<40x1xf32>
    %84 = math.exp %83 : vector<40x1xf32>
    %85 = arith.mulf %84, %14 : vector<40x1xf32>
    %cst_46 = arith.constant dense<0.000000e+00> : vector<16x1xf32>
    %86 = tpu.matmul %13, %85, %cst_46 {dimension_numbers = #tpu.dot_dimension_numbers<[1], [0], [0], [1], [0, 0, 1, 1], [], []>} : vector<16x40xf32>, vector<40x1xf32>, vector<16x1xf32> -> vector<16x1xf32>
    %cst_47 = arith.constant dense<0.000000e+00> : vector<40x1xf32>
    %87 = tpu.matmul %11, %86, %cst_47 {dimension_numbers = #tpu.dot_dimension_numbers<[1], [0], [0], [1], [0, 0, 1, 1], [], []>} : vector<40x16xf32>, vector<16x1xf32>, vector<40x1xf32> -> vector<40x1xf32>
    %cst_48 = arith.constant 1.000000e+00 : f32
    %88 = vector.broadcast %cst_48 : f32 to vector<40x1xf32>
    %89 = arith.subf %88, %14 : vector<40x1xf32>
    %90 = arith.addf %87, %89 : vector<40x1xf32>
    %91 = tpu.reciprocal %90 {approx = true} : vector<40x1xf32> -> vector<40x1xf32>
    %92 = arith.mulf %85, %91 : vector<40x1xf32>
    %93 = vector.extract_strided_slice %30 {offsets = [0, 32], sizes = [40, 32], strides = [1, 1]} : vector<40x64xf32> to vector<40x32xf32>
    %94 = vector.broadcast %92 : vector<40x1xf32> to vector<40x32xf32>
    %95 = arith.mulf %94, %93 : vector<40x32xf32>
    %cst_49 = arith.constant dense<0.000000e+00> : vector<16x32xf32>
    %96 = tpu.matmul %13, %95, %cst_49 {dimension_numbers = #tpu.dot_dimension_numbers<[1], [0], [0], [1], [0, 0, 1, 1], [], []>} : vector<16x40xf32>, vector<40x32xf32>, vector<16x32xf32> -> vector<16x32xf32>
    %97 = arith.addf %69, %96 : vector<16x32xf32>
    %cst_50 = arith.constant 5.000000e-01 : f32
    %98 = vector.broadcast %cst_50 : f32 to vector<16x32xf32>
    %99 = arith.mulf %97, %98 : vector<16x32xf32>
    %c0_51 = arith.constant 0 : index
    %c0_52 = arith.constant 0 : index
    %100 = vector.load %arg14[%c0_51, %c0_52] : memref<1x32xf32, #tpu.memory_space<vmem>>, vector<1x32xf32>
    %101 = vector.broadcast %100 : vector<1x32xf32> to vector<16x32xf32>
    %102 = arith.addf %99, %101 : vector<16x32xf32>
    %cst_53 = arith.constant 0.000000e+00 : f32
    %103 = vector.broadcast %cst_53 : f32 to vector<16x32xf32>
    %104 = arith.maximumf %102, %103 : vector<16x32xf32>
    %c0_54 = arith.constant 0 : index
    %c0_55 = arith.constant 0 : index
    %105 = vector.load %arg15[%c0_54, %c0_55] : memref<32x128xf32, #tpu.memory_space<vmem>>, vector<32x128xf32>
    %cst_56 = arith.constant dense<0.000000e+00> : vector<16x128xf32>
    %106 = tpu.matmul %104, %105, %cst_56 {dimension_numbers = #tpu.dot_dimension_numbers<[1], [0], [0], [1], [0, 0, 1, 1], [], []>} : vector<16x32xf32>, vector<32x128xf32>, vector<16x128xf32> -> vector<16x128xf32>
    %c0_57 = arith.constant 0 : index
    %c0_58 = arith.constant 0 : index
    %107 = vector.load %arg16[%c0_57, %c0_58] : memref<1x128xf32, #tpu.memory_space<vmem>>, vector<1x128xf32>
    %108 = vector.broadcast %107 : vector<1x128xf32> to vector<16x128xf32>
    %109 = arith.addf %106, %108 : vector<16x128xf32>
    %110 = vector.extract_strided_slice %109 {offsets = [0, 0], sizes = [16, 64], strides = [1, 1]} : vector<16x128xf32> to vector<16x64xf32>
    %111 = vector.extract_strided_slice %109 {offsets = [0, 64], sizes = [16, 64], strides = [1, 1]} : vector<16x128xf32> to vector<16x64xf32>
    %cst_59 = arith.constant dense<0.000000e+00> : vector<40x64xf32>
    %112 = tpu.matmul %9, %110, %cst_59 {dimension_numbers = #tpu.dot_dimension_numbers<[1], [0], [0], [1], [0, 0, 1, 1], [], []>} : vector<40x16xf32>, vector<16x64xf32>, vector<40x64xf32> -> vector<40x64xf32>
    %cst_60 = arith.constant dense<0.000000e+00> : vector<40x64xf32>
    %113 = tpu.matmul %11, %111, %cst_60 {dimension_numbers = #tpu.dot_dimension_numbers<[1], [0], [0], [1], [0, 0, 1, 1], [], []>} : vector<40x16xf32>, vector<16x64xf32>, vector<40x64xf32> -> vector<40x64xf32>
    %c0_61 = arith.constant 0 : index
    %c0_62 = arith.constant 0 : index
    %114 = vector.load %arg17[%c0_61, %c0_62] : memref<16x64xf32, #tpu.memory_space<vmem>>, vector<16x64xf32>
    %cst_63 = arith.constant dense<0.000000e+00> : vector<40x64xf32>
    %115 = tpu.matmul %22, %114, %cst_63 {dimension_numbers = #tpu.dot_dimension_numbers<[1], [0], [0], [1], [0, 0, 1, 1], [], []>} : vector<40x16xf32>, vector<16x64xf32>, vector<40x64xf32> -> vector<40x64xf32>
    %116 = arith.addf %113, %112 : vector<40x64xf32>
    %117 = arith.addf %116, %115 : vector<40x64xf32>
    %cst_64 = arith.constant 0.000000e+00 : f32
    %118 = vector.broadcast %cst_64 : f32 to vector<40x64xf32>
    %119 = arith.cmpf ogt, %117, %118 : vector<40x64xf32>
    %cst_65 = arith.constant 2.000000e-01 : f32
    %120 = vector.broadcast %cst_65 : f32 to vector<40x64xf32>
    %121 = arith.mulf %120, %117 : vector<40x64xf32>
    %122 = arith.select %119, %117, %121 : vector<40x64xi1>, vector<40x64xf32>
    %c0_66 = arith.constant 0 : index
    %c0_67 = arith.constant 0 : index
    %123 = vector.load %arg18[%c0_66, %c0_67] : memref<64x2xf32, #tpu.memory_space<vmem>>, vector<64x2xf32>
    %cst_68 = arith.constant dense<0.000000e+00> : vector<40x2xf32>
    %124 = tpu.matmul %122, %123, %cst_68 {dimension_numbers = #tpu.dot_dimension_numbers<[1], [0], [0], [1], [0, 0, 1, 1], [], []>} : vector<40x64xf32>, vector<64x2xf32>, vector<40x2xf32> -> vector<40x2xf32>
    %125 = vector.extract_strided_slice %124 {offsets = [0, 0], sizes = [40, 1], strides = [1, 1]} : vector<40x2xf32> to vector<40x1xf32>
    %cst_69 = arith.constant 0.000000e+00 : f32
    %126 = vector.broadcast %cst_69 : f32 to vector<40x16xf32>
    %127 = arith.cmpf ogt, %11, %126 : vector<40x16xf32>
    %cst_70 = arith.constant -1.000000e+30 : f32
    %128 = vector.shape_cast %125 : vector<40x1xf32> to vector<40x1xf32>
    %129 = vector.broadcast %128 : vector<40x1xf32> to vector<40x16xf32>
    %130 = vector.broadcast %cst_70 : f32 to vector<40x16xf32>
    %131 = arith.select %127, %129, %130 : vector<40x16xi1>, vector<40x16xf32>
    %cst_71 = arith.constant dense<0xFF800000> : vector<16xf32>
    %132 = vector.multi_reduction <maximumf>, %131, %cst_71 [0] : vector<40x16xf32> to vector<16xf32>
    %133 = vector.shape_cast %132 : vector<16xf32> to vector<1x16xf32>
    %134 = vector.broadcast %133 : vector<1x16xf32> to vector<40x16xf32>
    %135 = arith.mulf %11, %134 : vector<40x16xf32>
    %cst_72 = arith.constant dense<0.000000e+00> : vector<40xf32>
    %136 = vector.multi_reduction <add>, %135, %cst_72 [1] : vector<40x16xf32> to vector<40xf32>
    %137 = vector.shape_cast %136 : vector<40xf32> to vector<40x1xf32>
    %138 = arith.subf %125, %137 : vector<40x1xf32>
    %139 = math.exp %138 : vector<40x1xf32>
    %140 = arith.mulf %139, %14 : vector<40x1xf32>
    %cst_73 = arith.constant dense<0.000000e+00> : vector<16x1xf32>
    %141 = tpu.matmul %13, %140, %cst_73 {dimension_numbers = #tpu.dot_dimension_numbers<[1], [0], [0], [1], [0, 0, 1, 1], [], []>} : vector<16x40xf32>, vector<40x1xf32>, vector<16x1xf32> -> vector<16x1xf32>
    %cst_74 = arith.constant dense<0.000000e+00> : vector<40x1xf32>
    %142 = tpu.matmul %11, %141, %cst_74 {dimension_numbers = #tpu.dot_dimension_numbers<[1], [0], [0], [1], [0, 0, 1, 1], [], []>} : vector<40x16xf32>, vector<16x1xf32>, vector<40x1xf32> -> vector<40x1xf32>
    %cst_75 = arith.constant 1.000000e+00 : f32
    %143 = vector.broadcast %cst_75 : f32 to vector<40x1xf32>
    %144 = arith.subf %143, %14 : vector<40x1xf32>
    %145 = arith.addf %142, %144 : vector<40x1xf32>
    %146 = tpu.reciprocal %145 {approx = true} : vector<40x1xf32> -> vector<40x1xf32>
    %147 = arith.mulf %140, %146 : vector<40x1xf32>
    %148 = vector.extract_strided_slice %112 {offsets = [0, 0], sizes = [40, 32], strides = [1, 1]} : vector<40x64xf32> to vector<40x32xf32>
    %149 = vector.broadcast %147 : vector<40x1xf32> to vector<40x32xf32>
    %150 = arith.mulf %149, %148 : vector<40x32xf32>
    %cst_76 = arith.constant dense<0.000000e+00> : vector<16x32xf32>
    %151 = tpu.matmul %13, %150, %cst_76 {dimension_numbers = #tpu.dot_dimension_numbers<[1], [0], [0], [1], [0, 0, 1, 1], [], []>} : vector<16x40xf32>, vector<40x32xf32>, vector<16x32xf32> -> vector<16x32xf32>
    %152 = vector.extract_strided_slice %124 {offsets = [0, 1], sizes = [40, 1], strides = [1, 1]} : vector<40x2xf32> to vector<40x1xf32>
    %cst_77 = arith.constant 0.000000e+00 : f32
    %153 = vector.broadcast %cst_77 : f32 to vector<40x16xf32>
    %154 = arith.cmpf ogt, %11, %153 : vector<40x16xf32>
    %cst_78 = arith.constant -1.000000e+30 : f32
    %155 = vector.shape_cast %152 : vector<40x1xf32> to vector<40x1xf32>
    %156 = vector.broadcast %155 : vector<40x1xf32> to vector<40x16xf32>
    %157 = vector.broadcast %cst_78 : f32 to vector<40x16xf32>
    %158 = arith.select %154, %156, %157 : vector<40x16xi1>, vector<40x16xf32>
    %cst_79 = arith.constant dense<0xFF800000> : vector<16xf32>
    %159 = vector.multi_reduction <maximumf>, %158, %cst_79 [0] : vector<40x16xf32> to vector<16xf32>
    %160 = vector.shape_cast %159 : vector<16xf32> to vector<1x16xf32>
    %161 = vector.broadcast %160 : vector<1x16xf32> to vector<40x16xf32>
    %162 = arith.mulf %11, %161 : vector<40x16xf32>
    %cst_80 = arith.constant dense<0.000000e+00> : vector<40xf32>
    %163 = vector.multi_reduction <add>, %162, %cst_80 [1] : vector<40x16xf32> to vector<40xf32>
    %164 = vector.shape_cast %163 : vector<40xf32> to vector<40x1xf32>
    %165 = arith.subf %152, %164 : vector<40x1xf32>
    %166 = math.exp %165 : vector<40x1xf32>
    %167 = arith.mulf %166, %14 : vector<40x1xf32>
    %cst_81 = arith.constant dense<0.000000e+00> : vector<16x1xf32>
    %168 = tpu.matmul %13, %167, %cst_81 {dimension_numbers = #tpu.dot_dimension_numbers<[1], [0], [0], [1], [0, 0, 1, 1], [], []>} : vector<16x40xf32>, vector<40x1xf32>, vector<16x1xf32> -> vector<16x1xf32>
    %cst_82 = arith.constant dense<0.000000e+00> : vector<40x1xf32>
    %169 = tpu.matmul %11, %168, %cst_82 {dimension_numbers = #tpu.dot_dimension_numbers<[1], [0], [0], [1], [0, 0, 1, 1], [], []>} : vector<40x16xf32>, vector<16x1xf32>, vector<40x1xf32> -> vector<40x1xf32>
    %cst_83 = arith.constant 1.000000e+00 : f32
    %170 = vector.broadcast %cst_83 : f32 to vector<40x1xf32>
    %171 = arith.subf %170, %14 : vector<40x1xf32>
    %172 = arith.addf %169, %171 : vector<40x1xf32>
    %173 = tpu.reciprocal %172 {approx = true} : vector<40x1xf32> -> vector<40x1xf32>
    %174 = arith.mulf %167, %173 : vector<40x1xf32>
    %175 = vector.extract_strided_slice %112 {offsets = [0, 32], sizes = [40, 32], strides = [1, 1]} : vector<40x64xf32> to vector<40x32xf32>
    %176 = vector.broadcast %174 : vector<40x1xf32> to vector<40x32xf32>
    %177 = arith.mulf %176, %175 : vector<40x32xf32>
    %cst_84 = arith.constant dense<0.000000e+00> : vector<16x32xf32>
    %178 = tpu.matmul %13, %177, %cst_84 {dimension_numbers = #tpu.dot_dimension_numbers<[1], [0], [0], [1], [0, 0, 1, 1], [], []>} : vector<16x40xf32>, vector<40x32xf32>, vector<16x32xf32> -> vector<16x32xf32>
    %179 = arith.addf %151, %178 : vector<16x32xf32>
    %cst_85 = arith.constant 5.000000e-01 : f32
    %180 = vector.broadcast %cst_85 : f32 to vector<16x32xf32>
    %181 = arith.mulf %179, %180 : vector<16x32xf32>
    %c0_86 = arith.constant 0 : index
    %c0_87 = arith.constant 0 : index
    %182 = vector.load %arg19[%c0_86, %c0_87] : memref<1x32xf32, #tpu.memory_space<vmem>>, vector<1x32xf32>
    %183 = vector.broadcast %182 : vector<1x32xf32> to vector<16x32xf32>
    %184 = arith.addf %181, %183 : vector<16x32xf32>
    %cst_88 = arith.constant 0.000000e+00 : f32
    %185 = vector.broadcast %cst_88 : f32 to vector<16x32xf32>
    %186 = arith.maximumf %184, %185 : vector<16x32xf32>
    %c0_89 = arith.constant 0 : index
    %c0_90 = arith.constant 0 : index
    %187 = vector.load %arg20[%c0_89, %c0_90] : memref<32x128xf32, #tpu.memory_space<vmem>>, vector<32x128xf32>
    %cst_91 = arith.constant dense<0.000000e+00> : vector<16x128xf32>
    %188 = tpu.matmul %186, %187, %cst_91 {dimension_numbers = #tpu.dot_dimension_numbers<[1], [0], [0], [1], [0, 0, 1, 1], [], []>} : vector<16x32xf32>, vector<32x128xf32>, vector<16x128xf32> -> vector<16x128xf32>
    %c0_92 = arith.constant 0 : index
    %c0_93 = arith.constant 0 : index
    %189 = vector.load %arg21[%c0_92, %c0_93] : memref<1x128xf32, #tpu.memory_space<vmem>>, vector<1x128xf32>
    %190 = vector.broadcast %189 : vector<1x128xf32> to vector<16x128xf32>
    %191 = arith.addf %188, %190 : vector<16x128xf32>
    %192 = vector.extract_strided_slice %191 {offsets = [0, 0], sizes = [16, 64], strides = [1, 1]} : vector<16x128xf32> to vector<16x64xf32>
    %193 = vector.extract_strided_slice %191 {offsets = [0, 64], sizes = [16, 64], strides = [1, 1]} : vector<16x128xf32> to vector<16x64xf32>
    %cst_94 = arith.constant dense<0.000000e+00> : vector<40x64xf32>
    %194 = tpu.matmul %9, %192, %cst_94 {dimension_numbers = #tpu.dot_dimension_numbers<[1], [0], [0], [1], [0, 0, 1, 1], [], []>} : vector<40x16xf32>, vector<16x64xf32>, vector<40x64xf32> -> vector<40x64xf32>
    %cst_95 = arith.constant dense<0.000000e+00> : vector<40x64xf32>
    %195 = tpu.matmul %11, %193, %cst_95 {dimension_numbers = #tpu.dot_dimension_numbers<[1], [0], [0], [1], [0, 0, 1, 1], [], []>} : vector<40x16xf32>, vector<16x64xf32>, vector<40x64xf32> -> vector<40x64xf32>
    %c0_96 = arith.constant 0 : index
    %c0_97 = arith.constant 0 : index
    %196 = vector.load %arg22[%c0_96, %c0_97] : memref<16x64xf32, #tpu.memory_space<vmem>>, vector<16x64xf32>
    %cst_98 = arith.constant dense<0.000000e+00> : vector<40x64xf32>
    %197 = tpu.matmul %22, %196, %cst_98 {dimension_numbers = #tpu.dot_dimension_numbers<[1], [0], [0], [1], [0, 0, 1, 1], [], []>} : vector<40x16xf32>, vector<16x64xf32>, vector<40x64xf32> -> vector<40x64xf32>
    %198 = arith.addf %195, %194 : vector<40x64xf32>
    %199 = arith.addf %198, %197 : vector<40x64xf32>
    %cst_99 = arith.constant 0.000000e+00 : f32
    %200 = vector.broadcast %cst_99 : f32 to vector<40x64xf32>
    %201 = arith.cmpf ogt, %199, %200 : vector<40x64xf32>
    %cst_100 = arith.constant 2.000000e-01 : f32
    %202 = vector.broadcast %cst_100 : f32 to vector<40x64xf32>
    %203 = arith.mulf %202, %199 : vector<40x64xf32>
    %204 = arith.select %201, %199, %203 : vector<40x64xi1>, vector<40x64xf32>
    %c0_101 = arith.constant 0 : index
    %c0_102 = arith.constant 0 : index
    %205 = vector.load %arg23[%c0_101, %c0_102] : memref<64x2xf32, #tpu.memory_space<vmem>>, vector<64x2xf32>
    %cst_103 = arith.constant dense<0.000000e+00> : vector<40x2xf32>
    %206 = tpu.matmul %204, %205, %cst_103 {dimension_numbers = #tpu.dot_dimension_numbers<[1], [0], [0], [1], [0, 0, 1, 1], [], []>} : vector<40x64xf32>, vector<64x2xf32>, vector<40x2xf32> -> vector<40x2xf32>
    %207 = vector.extract_strided_slice %206 {offsets = [0, 0], sizes = [40, 1], strides = [1, 1]} : vector<40x2xf32> to vector<40x1xf32>
    %cst_104 = arith.constant 0.000000e+00 : f32
    %208 = vector.broadcast %cst_104 : f32 to vector<40x16xf32>
    %209 = arith.cmpf ogt, %11, %208 : vector<40x16xf32>
    %cst_105 = arith.constant -1.000000e+30 : f32
    %210 = vector.shape_cast %207 : vector<40x1xf32> to vector<40x1xf32>
    %211 = vector.broadcast %210 : vector<40x1xf32> to vector<40x16xf32>
    %212 = vector.broadcast %cst_105 : f32 to vector<40x16xf32>
    %213 = arith.select %209, %211, %212 : vector<40x16xi1>, vector<40x16xf32>
    %cst_106 = arith.constant dense<0xFF800000> : vector<16xf32>
    %214 = vector.multi_reduction <maximumf>, %213, %cst_106 [0] : vector<40x16xf32> to vector<16xf32>
    %215 = vector.shape_cast %214 : vector<16xf32> to vector<1x16xf32>
    %216 = vector.broadcast %215 : vector<1x16xf32> to vector<40x16xf32>
    %217 = arith.mulf %11, %216 : vector<40x16xf32>
    %cst_107 = arith.constant dense<0.000000e+00> : vector<40xf32>
    %218 = vector.multi_reduction <add>, %217, %cst_107 [1] : vector<40x16xf32> to vector<40xf32>
    %219 = vector.shape_cast %218 : vector<40xf32> to vector<40x1xf32>
    %220 = arith.subf %207, %219 : vector<40x1xf32>
    %221 = math.exp %220 : vector<40x1xf32>
    %222 = arith.mulf %221, %14 : vector<40x1xf32>
    %cst_108 = arith.constant dense<0.000000e+00> : vector<16x1xf32>
    %223 = tpu.matmul %13, %222, %cst_108 {dimension_numbers = #tpu.dot_dimension_numbers<[1], [0], [0], [1], [0, 0, 1, 1], [], []>} : vector<16x40xf32>, vector<40x1xf32>, vector<16x1xf32> -> vector<16x1xf32>
    %cst_109 = arith.constant dense<0.000000e+00> : vector<40x1xf32>
    %224 = tpu.matmul %11, %223, %cst_109 {dimension_numbers = #tpu.dot_dimension_numbers<[1], [0], [0], [1], [0, 0, 1, 1], [], []>} : vector<40x16xf32>, vector<16x1xf32>, vector<40x1xf32> -> vector<40x1xf32>
    %cst_110 = arith.constant 1.000000e+00 : f32
    %225 = vector.broadcast %cst_110 : f32 to vector<40x1xf32>
    %226 = arith.subf %225, %14 : vector<40x1xf32>
    %227 = arith.addf %224, %226 : vector<40x1xf32>
    %228 = tpu.reciprocal %227 {approx = true} : vector<40x1xf32> -> vector<40x1xf32>
    %229 = arith.mulf %222, %228 : vector<40x1xf32>
    %230 = vector.extract_strided_slice %194 {offsets = [0, 0], sizes = [40, 32], strides = [1, 1]} : vector<40x64xf32> to vector<40x32xf32>
    %231 = vector.broadcast %229 : vector<40x1xf32> to vector<40x32xf32>
    %232 = arith.mulf %231, %230 : vector<40x32xf32>
    %cst_111 = arith.constant dense<0.000000e+00> : vector<16x32xf32>
    %233 = tpu.matmul %13, %232, %cst_111 {dimension_numbers = #tpu.dot_dimension_numbers<[1], [0], [0], [1], [0, 0, 1, 1], [], []>} : vector<16x40xf32>, vector<40x32xf32>, vector<16x32xf32> -> vector<16x32xf32>
    %234 = vector.extract_strided_slice %206 {offsets = [0, 1], sizes = [40, 1], strides = [1, 1]} : vector<40x2xf32> to vector<40x1xf32>
    %cst_112 = arith.constant 0.000000e+00 : f32
    %235 = vector.broadcast %cst_112 : f32 to vector<40x16xf32>
    %236 = arith.cmpf ogt, %11, %235 : vector<40x16xf32>
    %cst_113 = arith.constant -1.000000e+30 : f32
    %237 = vector.shape_cast %234 : vector<40x1xf32> to vector<40x1xf32>
    %238 = vector.broadcast %237 : vector<40x1xf32> to vector<40x16xf32>
    %239 = vector.broadcast %cst_113 : f32 to vector<40x16xf32>
    %240 = arith.select %236, %238, %239 : vector<40x16xi1>, vector<40x16xf32>
    %cst_114 = arith.constant dense<0xFF800000> : vector<16xf32>
    %241 = vector.multi_reduction <maximumf>, %240, %cst_114 [0] : vector<40x16xf32> to vector<16xf32>
    %242 = vector.shape_cast %241 : vector<16xf32> to vector<1x16xf32>
    %243 = vector.broadcast %242 : vector<1x16xf32> to vector<40x16xf32>
    %244 = arith.mulf %11, %243 : vector<40x16xf32>
    %cst_115 = arith.constant dense<0.000000e+00> : vector<40xf32>
    %245 = vector.multi_reduction <add>, %244, %cst_115 [1] : vector<40x16xf32> to vector<40xf32>
    %246 = vector.shape_cast %245 : vector<40xf32> to vector<40x1xf32>
    %247 = arith.subf %234, %246 : vector<40x1xf32>
    %248 = math.exp %247 : vector<40x1xf32>
    %249 = arith.mulf %248, %14 : vector<40x1xf32>
    %cst_116 = arith.constant dense<0.000000e+00> : vector<16x1xf32>
    %250 = tpu.matmul %13, %249, %cst_116 {dimension_numbers = #tpu.dot_dimension_numbers<[1], [0], [0], [1], [0, 0, 1, 1], [], []>} : vector<16x40xf32>, vector<40x1xf32>, vector<16x1xf32> -> vector<16x1xf32>
    %cst_117 = arith.constant dense<0.000000e+00> : vector<40x1xf32>
    %251 = tpu.matmul %11, %250, %cst_117 {dimension_numbers = #tpu.dot_dimension_numbers<[1], [0], [0], [1], [0, 0, 1, 1], [], []>} : vector<40x16xf32>, vector<16x1xf32>, vector<40x1xf32> -> vector<40x1xf32>
    %cst_118 = arith.constant 1.000000e+00 : f32
    %252 = vector.broadcast %cst_118 : f32 to vector<40x1xf32>
    %253 = arith.subf %252, %14 : vector<40x1xf32>
    %254 = arith.addf %251, %253 : vector<40x1xf32>
    %255 = tpu.reciprocal %254 {approx = true} : vector<40x1xf32> -> vector<40x1xf32>
    %256 = arith.mulf %249, %255 : vector<40x1xf32>
    %257 = vector.extract_strided_slice %194 {offsets = [0, 32], sizes = [40, 32], strides = [1, 1]} : vector<40x64xf32> to vector<40x32xf32>
    %258 = vector.broadcast %256 : vector<40x1xf32> to vector<40x32xf32>
    %259 = arith.mulf %258, %257 : vector<40x32xf32>
    %cst_119 = arith.constant dense<0.000000e+00> : vector<16x32xf32>
    %260 = tpu.matmul %13, %259, %cst_119 {dimension_numbers = #tpu.dot_dimension_numbers<[1], [0], [0], [1], [0, 0, 1, 1], [], []>} : vector<16x40xf32>, vector<40x32xf32>, vector<16x32xf32> -> vector<16x32xf32>
    %261 = arith.addf %233, %260 : vector<16x32xf32>
    %cst_120 = arith.constant 5.000000e-01 : f32
    %262 = vector.broadcast %cst_120 : f32 to vector<16x32xf32>
    %263 = arith.mulf %261, %262 : vector<16x32xf32>
    %c0_121 = arith.constant 0 : index
    %c0_122 = arith.constant 0 : index
    %264 = vector.load %arg24[%c0_121, %c0_122] : memref<1x32xf32, #tpu.memory_space<vmem>>, vector<1x32xf32>
    %265 = vector.broadcast %264 : vector<1x32xf32> to vector<16x32xf32>
    %266 = arith.addf %263, %265 : vector<16x32xf32>
    %c0_123 = arith.constant 0 : index
    %c0_124 = arith.constant 0 : index
    %267 = vector.load %arg9[%c0_123, %c0_124] : memref<2x16xbf16, #tpu.memory_space<vmem>>, vector<2x16xbf16>
    %268 = arith.extf %267 : vector<2x16xbf16> to vector<2x16xf32>
    %cst_125 = arith.constant dense<0.000000e+00> : vector<2x32xf32>
    %269 = tpu.matmul %268, %266, %cst_125 {dimension_numbers = #tpu.dot_dimension_numbers<[1], [0], [0], [1], [0, 0, 1, 1], [], []>} : vector<2x16xf32>, vector<16x32xf32>, vector<2x32xf32> -> vector<2x32xf32>
    %c0_126 = arith.constant 0 : index
    %c0_127 = arith.constant 0 : index
    %270 = vector.load %arg25[%c0_126, %c0_127] : memref<2x32xf32, #tpu.memory_space<vmem>>, vector<2x32xf32>
    tpu.vector_store %arg25[%c0_126, %c0_127], %269 {strides = array<i32>} : memref<2x32xf32, #tpu.memory_space<vmem>>, vector<2x32xf32>,
    return
  }
}

</mosaic_0001>

<llo_original>
// kernel: tpu_custom_call.1
$region0: #{tpu_custom_call.1}
  #allocation0 [shape = 'u32[]', space=smem, size = 0x4, offset = 0x4, fixed_abs, tag = 'smem constant byte address 0x4 - core index']
  #allocation1 [shape = 'u32[72,128]{1,0:T(1,128)}', space=vmem, size = 0x9000, scoped, tag = 'internal scratch']
  %s0 = inlined_call_operand.vmem [shape: s32[16,1], index: 0, kind: input, shape index: {}]
  %s1 = inlined_call_operand.vmem [shape: f32[36,32], index: 1, kind: input, shape index: {}]
  %s2 = inlined_call_operand.vmem [shape: f32[8,16], index: 2, kind: input, shape index: {}]
  %s3 = inlined_call_operand.vmem [shape: f32[1,16], index: 3, kind: input, shape index: {}]
  %s4 = inlined_call_operand.vmem [shape: bf16[40,16], index: 4, kind: input, shape index: {}]
  %s5 = inlined_call_operand.vmem [shape: bf16[40,16], index: 5, kind: input, shape index: {}]
  %s6 = inlined_call_operand.vmem [shape: bf16[16,40], index: 6, kind: input, shape index: {}]
  %s7 = inlined_call_operand.vmem [shape: f32[40,1], index: 7, kind: input, shape index: {}]
  %s8 = inlined_call_operand.vmem [shape: f32[40,8], index: 8, kind: input, shape index: {}]
  %s9 = inlined_call_operand.vmem [shape: bf16[2,16], index: 9, kind: input, shape index: {}]
  %s10 = inlined_call_operand.vmem [shape: f32[32,128], index: 10, kind: input, shape index: {}]
  %s11 = inlined_call_operand.vmem [shape: f32[1,128], index: 11, kind: input, shape index: {}]
  %s12 = inlined_call_operand.vmem [shape: f32[16,64], index: 12, kind: input, shape index: {}]
  %s13 = inlined_call_operand.vmem [shape: f32[64,2], index: 13, kind: input, shape index: {}]
  %s14 = inlined_call_operand.vmem [shape: f32[1,32], index: 14, kind: input, shape index: {}]
  %s15 = inlined_call_operand.vmem [shape: f32[32,128], index: 15, kind: input, shape index: {}]
  %s16 = inlined_call_operand.vmem [shape: f32[1,128], index: 16, kind: input, shape index: {}]
  %s17 = inlined_call_operand.vmem [shape: f32[16,64], index: 17, kind: input, shape index: {}]
  %s18 = inlined_call_operand.vmem [shape: f32[64,2], index: 18, kind: input, shape index: {}]
  %s19 = inlined_call_operand.vmem [shape: f32[1,32], index: 19, kind: input, shape index: {}]
  %s20 = inlined_call_operand.vmem [shape: f32[32,128], index: 20, kind: input, shape index: {}]
  %s21 = inlined_call_operand.vmem [shape: f32[1,128], index: 21, kind: input, shape index: {}]
  %s22 = inlined_call_operand.vmem [shape: f32[16,64], index: 22, kind: input, shape index: {}]
  %s23 = inlined_call_operand.vmem [shape: f32[64,2], index: 23, kind: input, shape index: {}]
  %s24 = inlined_call_operand.vmem [shape: f32[1,32], index: 24, kind: input, shape index: {}]
  %s25 = inlined_call_operand.hbm [shape: f32[2,32], index: 25, kind: output, shape index: {}]
  %s26 = sld [smem:[#allocation0]]
  $region110: #{tpu_custom_call.1} parent=0
    _
  %s28 = ssub.s32 1, %s26
  %s29 = scalar_select 0, %s28, %s26
  $region1: #{tpu_custom_call.1} parent=0
    #allocation2 [shape = 'u8[1024]{0}', space=vmem, size = 0x400, scoped, tag = 'output window, operand 0, single buffered']
    #allocation3 [shape = 's32[1]{0}', space=sflag, size = 0x4, scoped, tag = 'scoped memory for tpu_custom_call.1']
    %30 = vsyncpa [#allocation3], 0
    // Predicated region
    $region2: #{tpu_custom_call.1} parent=1 // pred_check
      _
    $region3: #{tpu_custom_call.1} parent=1 // pred_check_branch
      %32 = sbr.rel (0) target = $region5
    $region4: #{tpu_custom_call.1} parent=1 // pred_region
      _
    $region5: #{tpu_custom_call.1} parent=1 // pred_fallthru
      _
    // Predicated region
    $region6: #{tpu_custom_call.1} parent=1 // pred_check
      _
    $region7: #{tpu_custom_call.1} parent=1 // pred_check_branch
      %34 = sbr.rel (0) target = $region9
    $region8: #{tpu_custom_call.1} parent=1 // pred_region
      _
    $region9: #{tpu_custom_call.1} parent=1 // pred_fallthru
      _
    // Predicated region
    $region10: #{tpu_custom_call.1} parent=1 // pred_check
      _
    $region11: #{tpu_custom_call.1} parent=1 // pred_check_branch
      %36 = sbr.rel (0) target = $region13
    $region12: #{tpu_custom_call.1} parent=1 // pred_region
      _
    $region13: #{tpu_custom_call.1} parent=1 // pred_fallthru
      _
    // Predicated region
    $region14: #{tpu_custom_call.1} parent=1 // pred_check
      _
    $region15: #{tpu_custom_call.1} parent=1 // pred_check_branch
      %38 = sbr.rel (0) target = $region17
    $region16: #{tpu_custom_call.1} parent=1 // pred_region
      _
    $region17: #{tpu_custom_call.1} parent=1 // pred_fallthru
      _
    // Predicated region
    $region18: #{tpu_custom_call.1} parent=1 // pred_check
      _
    $region19: #{tpu_custom_call.1} parent=1 // pred_check_branch
      %40 = sbr.rel (0) target = $region21
    $region20: #{tpu_custom_call.1} parent=1 // pred_region
      _
    $region21: #{tpu_custom_call.1} parent=1 // pred_fallthru
      _
    // Predicated region
    $region22: #{tpu_custom_call.1} parent=1 // pred_check
      _
    $region23: #{tpu_custom_call.1} parent=1 // pred_check_branch
      %42 = sbr.rel (0) target = $region25
    $region24: #{tpu_custom_call.1} parent=1 // pred_region
      _
    $region25: #{tpu_custom_call.1} parent=1 // pred_fallthru
      _
    // Predicated region
    $region26: #{tpu_custom_call.1} parent=1 // pred_check
      _
    $region27: #{tpu_custom_call.1} parent=1 // pred_check_branch
      %44 = sbr.rel (0) target = $region29
    $region28: #{tpu_custom_call.1} parent=1 // pred_region
      _
    $region29: #{tpu_custom_call.1} parent=1 // pred_fallthru
      _
    // Predicated region
    $region30: #{tpu_custom_call.1} parent=1 // pred_check
      _
    $region31: #{tpu_custom_call.1} parent=1 // pred_check_branch
      %46 = sbr.rel (0) target = $region33
    $region32: #{tpu_custom_call.1} parent=1 // pred_region
      _
    $region33: #{tpu_custom_call.1} parent=1 // pred_fallthru
      _
    // Predicated region
    $region34: #{tpu_custom_call.1} parent=1 // pred_check
      _
    $region35: #{tpu_custom_call.1} parent=1 // pred_check_branch
      %48 = sbr.rel (0) target = $region37
    $region36: #{tpu_custom_call.1} parent=1 // pred_region
      _
    $region37: #{tpu_custom_call.1} parent=1 // pred_fallthru
      _
    // Predicated region
    $region38: #{tpu_custom_call.1} parent=1 // pred_check
      _
    $region39: #{tpu_custom_call.1} parent=1 // pred_check_branch
      %50 = sbr.rel (0) target = $region41
    $region40: #{tpu_custom_call.1} parent=1 // pred_region
      _
    $region41: #{tpu_custom_call.1} parent=1 // pred_fallthru
      _
    // Predicated region
    $region42: #{tpu_custom_call.1} parent=1 // pred_check
      _
    $region43: #{tpu_custom_call.1} parent=1 // pred_check_branch
      %52 = sbr.rel (0) target = $region45
    $region44: #{tpu_custom_call.1} parent=1 // pred_region
      _
    $region45: #{tpu_custom_call.1} parent=1 // pred_fallthru
      _
    // Predicated region
    $region46: #{tpu_custom_call.1} parent=1 // pred_check
      _
    $region47: #{tpu_custom_call.1} parent=1 // pred_check_branch
      %54 = sbr.rel (0) target = $region49
    $region48: #{tpu_custom_call.1} parent=1 // pred_region
      _
    $region49: #{tpu_custom_call.1} parent=1 // pred_fallthru
      _
    // Predicated region
    $region50: #{tpu_custom_call.1} parent=1 // pred_check
      _
    $region51: #{tpu_custom_call.1} parent=1 // pred_check_branch
      %56 = sbr.rel (0) target = $region53
    $region52: #{tpu_custom_call.1} parent=1 // pred_region
      _
    $region53: #{tpu_custom_call.1} parent=1 // pred_fallthru
      _
    // Predicated region
    $region54: #{tpu_custom_call.1} parent=1 // pred_check
      _
    $region55: #{tpu_custom_call.1} parent=1 // pred_check_branch
      %58 = sbr.rel (0) target = $region57
    $region56: #{tpu_custom_call.1} parent=1 // pred_region
      _
    $region57: #{tpu_custom_call.1} parent=1 // pred_fallthru
      _
    // Predicated region
    $region58: #{tpu_custom_call.1} parent=1 // pred_check
      _
    $region59: #{tpu_custom_call.1} parent=1 // pred_check_branch
      %60 = sbr.rel (0) target = $region61
    $region60: #{tpu_custom_call.1} parent=1 // pred_region
      _
    $region61: #{tpu_custom_call.1} parent=1 // pred_fallthru
      _
    // Predicated region
    $region62: #{tpu_custom_call.1} parent=1 // pred_check
      _
    $region63: #{tpu_custom_call.1} parent=1 // pred_check_branch
      %62 = sbr.rel (0) target = $region65
    $region64: #{tpu_custom_call.1} parent=1 // pred_region
      _
    $region65: #{tpu_custom_call.1} parent=1 // pred_fallthru
      _
    // Predicated region
    $region66: #{tpu_custom_call.1} parent=1 // pred_check
      _
    $region67: #{tpu_custom_call.1} parent=1 // pred_check_branch
      %64 = sbr.rel (0) target = $region69
    $region68: #{tpu_custom_call.1} parent=1 // pred_region
      _
    $region69: #{tpu_custom_call.1} parent=1 // pred_fallthru
      _
    // Predicated region
    $region70: #{tpu_custom_call.1} parent=1 // pred_check
      _
    $region71: #{tpu_custom_call.1} parent=1 // pred_check_branch
      %66 = sbr.rel (0) target = $region73
    $region72: #{tpu_custom_call.1} parent=1 // pred_region
      _
    $region73: #{tpu_custom_call.1} parent=1 // pred_fallthru
      _
    // Predicated region
    $region74: #{tpu_custom_call.1} parent=1 // pred_check
      _
    $region75: #{tpu_custom_call.1} parent=1 // pred_check_branch
      %68 = sbr.rel (0) target = $region77
    $region76: #{tpu_custom_call.1} parent=1 // pred_region
      _
    $region77: #{tpu_custom_call.1} parent=1 // pred_fallthru
      _
    // Predicated region
    $region78: #{tpu_custom_call.1} parent=1 // pred_check
      _
    $region79: #{tpu_custom_call.1} parent=1 // pred_check_branch
      %70 = sbr.rel (0) target = $region81
    $region80: #{tpu_custom_call.1} parent=1 // pred_region
      _
    $region81: #{tpu_custom_call.1} parent=1 // pred_fallthru
      _
    // Predicated region
    $region82: #{tpu_custom_call.1} parent=1 // pred_check
      _
    $region83: #{tpu_custom_call.1} parent=1 // pred_check_branch
      %72 = sbr.rel (0) target = $region85
    $region84: #{tpu_custom_call.1} parent=1 // pred_region
      _
    $region85: #{tpu_custom_call.1} parent=1 // pred_fallthru
      _
    // Predicated region
    $region86: #{tpu_custom_call.1} parent=1 // pred_check
      _
    $region87: #{tpu_custom_call.1} parent=1 // pred_check_branch
      %74 = sbr.rel (0) target = $region89
    $region88: #{tpu_custom_call.1} parent=1 // pred_region
      _
    $region89: #{tpu_custom_call.1} parent=1 // pred_fallthru
      _
    // Predicated region
    $region90: #{tpu_custom_call.1} parent=1 // pred_check
      _
    $region91: #{tpu_custom_call.1} parent=1 // pred_check_branch
      %76 = sbr.rel (0) target = $region93
    $region92: #{tpu_custom_call.1} parent=1 // pred_region
      _
    $region93: #{tpu_custom_call.1} parent=1 // pred_fallthru
      _
    // Predicated region
    $region94: #{tpu_custom_call.1} parent=1 // pred_check
      _
    $region95: #{tpu_custom_call.1} parent=1 // pred_check_branch
      %78 = sbr.rel (0) target = $region97
    $region96: #{tpu_custom_call.1} parent=1 // pred_region
      _
    $region97: #{tpu_custom_call.1} parent=1 // pred_fallthru
      _
    // Predicated region
    $region98: #{tpu_custom_call.1} parent=1 // pred_check
      _
    $region99: #{tpu_custom_call.1} parent=1 // pred_check_branch
      %80 = sbr.rel (0) target = $region101
    $region100: #{tpu_custom_call.1} parent=1 // pred_region
      _
    $region101: #{tpu_custom_call.1} parent=1 // pred_fallthru
      _
    %v81 = vld [vmem:[%s0] sm:$0xff]
    %v82 = vld [vmem:[%s0 + $0x8] sm:$0xff]
    %v83 = vlaneseq
    %v84 = vand.u32 %v83, 127
    %85 = vset.pattern.permute.xlu0 0
    %86 = vperm.xlu0 %85, %v81
    %v87 = vpop.permute.xlu0 %86
    %88 = vset.pattern.permute.xlu0 0
    %89 = vperm.xlu0 %88, %v82
    %v90 = vpop.permute.xlu0 %89
    %vm91 = vcmp.eq.s32.totalorder %v87, %v84
    %vm92 = vcmp.eq.s32.totalorder %v90, %v84
    %v93 = vsel %vm91, 1, 0
    %v94 = vsel %vm92, 1, 0
    %v95 = vcvt.s32.f32 %v93
    %v96 = vcvt.s32.f32 %v94
    %v97 = vld [vmem:[%s1] sm:$0xff]
    %v98 = vld [vmem:[%s1 + $0x8] sm:$0xff]
    %v99 = vld [vmem:[%s1 + $0x10] sm:$0xff]
    %v100 = vld [vmem:[%s1 + $0x18] sm:$0xff]
    %v101 = vld [vmem:[%s1 + $0x20] sm:$0xf]
    %vm102 = vcmask 293888
    %v104 = vsel %vm102, %v95, 0
    %v107 = vsel %vm102, %v96, 0
    %vm109 = vcmask 1043456
    %v111 = vsel %vm109, %v101, 0
    %113 = vmatpush.msra.mxu0 0.0
    %114 = vmatpush.msra.mxu0 0.0
    %115 = vmatpush.msra.mxu0 0.0
    %116 = vmatpush.msra.mxu0 0.0
    %117 = vmatpush.msra.mxu0 0.0
    %118 = vmatpush.msra.mxu0 0.0
    %119 = vmatpush.msra.mxu0 0.0
    %120 = vmatpush.msra.mxu0 0.0
    %121 = vmatpush.msra.mxu0 0.0
    %122 = vmatpush.msra.mxu0 0.0
    %123 = vmatpush.msra.mxu0 0.0
    %124 = vmatpush.msra.mxu0 %v111
    %125 = vmatpush.msra.mxu0 %v100
    %126 = vmatpush.msra.mxu0 %v99
    %127 = vmatpush.msra.mxu0 %v98
    %128 = vmatpush.msra.mxu0 %v97
    %129 = vmatmul.f32.gmra.mxu0 %v104
    %v130 = vpop.f32.mrf.mxu0
    %v131 = vadd.f32 0.0, %v130
    %132 = vmatmul.f32.gmra.mxu0 %v107
    %v133 = vpop.f32.mrf.mxu0
    %v134 = vadd.f32 0.0, %v133
    %135 = vdwg.mxu0
    %v136 = vld [vmem:[%s4] sm:$0xf]
    %v137 = vld [vmem:[%s4 + $0x4] sm:$0xf]
    %v138 = vld [vmem:[%s4 + $0x8] sm:$0xf]
    %v139 = vld [vmem:[%s4 + $0xc] sm:$0xf]
    %v140 = vld [vmem:[%s4 + $0x10] sm:$0xf]
    %v141 = vunpack.c.l.bf16 %v136
    %v142 = vunpack.c.l.bf16 %v137
    %v143 = vunpack.c.l.bf16 %v138
    %v144 = vunpack.c.l.bf16 %v139
    %v145 = vunpack.c.l.bf16 %v140
    %v146 = vld [vmem:[%s5] sm:$0xf]
    %v147 = vld [vmem:[%s5 + $0x4] sm:$0xf]
    %v148 = vld [vmem:[%s5 + $0x8] sm:$0xf]
    %v149 = vld [vmem:[%s5 + $0xc] sm:$0xf]
    %v150 = vld [vmem:[%s5 + $0x10] sm:$0xf]
    %v151 = vunpack.c.l.bf16 %v146
    %v152 = vunpack.c.l.bf16 %v147
    %v153 = vunpack.c.l.bf16 %v148
    %v154 = vunpack.c.l.bf16 %v149
    %v155 = vunpack.c.l.bf16 %v150
    %v156 = vld [vmem:[%s6] sm:$0xf]
    %v157 = vld [vmem:[%s6 + $0x4] sm:$0xf]
    %v158 = vunpack.c.l.bf16 %v156
    %v159 = vunpack.c.l.bf16 %v157
    %v160 = vld [vmem:[%s7] sm:$0xff]
    %v161 = vld [vmem:[%s7 + $0x8] sm:$0xff]
    %v162 = vld [vmem:[%s7 + $0x10] sm:$0xff]
    %v163 = vld [vmem:[%s7 + $0x18] sm:$0xff]
    %v164 = vld [vmem:[%s7 + $0x20] sm:$0xff]
    %v165 = vld [vmem:[%s8] sm:$0xff]
    %v166 = vld [vmem:[%s8 + $0x8] sm:$0xff]
    %v167 = vld [vmem:[%s8 + $0x10] sm:$0xff]
    %v168 = vld [vmem:[%s8 + $0x18] sm:$0xff]
    %v169 = vld [vmem:[%s8 + $0x20] sm:$0xff]
    %v170 = vld [vmem:[%s2] sm:$0xff]
    %v171 = vld [vmem:[%s3] sm:$0x1]
    %v173 = vperm.slane %v171, 0
    %vm175 = vcmask 64512
    %v177 = vsel %vm175, %v165, 0
    %v180 = vsel %vm175, %v166, 0
    %v183 = vsel %vm175, %v167, 0
    %v186 = vsel %vm175, %v168, 0
    %v189 = vsel %vm175, %v169, 0
    %191 = vmatpush.msra.mxu0 0.0
    %192 = vmatpush.msra.mxu0 0.0
    %193 = vmatpush.msra.mxu0 0.0
    %194 = vmatpush.msra.mxu0 0.0
    %195 = vmatpush.msra.mxu0 0.0
    %196 = vmatpush.msra.mxu0 0.0
    %197 = vmatpush.msra.mxu0 0.0
    %198 = vmatpush.msra.mxu0 0.0
    %199 = vmatpush.msra.mxu0 0.0
    %200 = vmatpush.msra.mxu0 0.0
    %201 = vmatpush.msra.mxu0 0.0
    %202 = vmatpush.msra.mxu0 0.0
    %203 = vmatpush.msra.mxu0 0.0
    %204 = vmatpush.msra.mxu0 0.0
    %205 = vmatpush.msra.mxu0 0.0
    %206 = vmatpush.msra.mxu0 %v170
    %207 = vmatmul.f32.gmra.mxu0 %v177
    %v208 = vpop.f32.mrf.mxu0
    %v209 = vadd.f32 %v173, %v208
    %210 = vmatmul.f32.gmra.mxu0 %v180
    %v211 = vpop.f32.mrf.mxu0
    %v212 = vadd.f32 %v173, %v211
    %213 = vmatmul.f32.gmra.mxu0 %v183
    %v214 = vpop.f32.mrf.mxu0
    %v215 = vadd.f32 %v173, %v214
    %216 = vmatmul.f32.gmra.mxu0 %v186
    %v217 = vpop.f32.mrf.mxu0
    %v218 = vadd.f32 %v173, %v217
    %219 = vmatmul.f32.gmra.mxu0 %v189
    %v220 = vpop.f32.mrf.mxu0
    %v221 = vadd.f32 %v173, %v220
    %222 = vdwg.mxu0
    %v223 = vmax.f32 %v209, 0.0
    %v224 = vmax.f32 %v212, 0.0
    %v225 = vmax.f32 %v215, 0.0
    %v226 = vmax.f32 %v218, 0.0
    %v227 = vmax.f32 %v221, 0.0
    %v228 = vld [vmem:[%s10] sm:$0xff]
    %v229 = vld [vmem:[%s10 + $0x8] sm:$0xff]
    %v230 = vld [vmem:[%s10 + $0x10] sm:$0xff]
    %v231 = vld [vmem:[%s10 + $0x18] sm:$0xff]
    %v232 = vld [vmem:[%s11] sm:$0x1]
    %v234 = vperm.slane %v232, 0
    %vm236 = vcmask 261120
    %v238 = vsel %vm236, %v131, 0
    %v241 = vsel %vm236, %v134, 0
    %243 = vmatpush.msra.mxu0 0.0
    %244 = vmatpush.msra.mxu0 0.0
    %245 = vmatpush.msra.mxu0 0.0
    %246 = vmatpush.msra.mxu0 0.0
    %247 = vmatpush.msra.mxu0 0.0
    %248 = vmatpush.msra.mxu0 0.0
    %249 = vmatpush.msra.mxu0 0.0
    %250 = vmatpush.msra.mxu0 0.0
    %251 = vmatpush.msra.mxu0 0.0
    %252 = vmatpush.msra.mxu0 0.0
    %253 = vmatpush.msra.mxu0 0.0
    %254 = vmatpush.msra.mxu0 0.0
    %255 = vmatpush.msra.mxu0 %v231
    %256 = vmatpush.msra.mxu0 %v230
    %257 = vmatpush.msra.mxu0 %v229
    %258 = vmatpush.msra.mxu0 %v228
    %259 = vmatmul.f32.gmra.mxu0 %v238
    %v260 = vpop.f32.mrf.mxu0
    %v261 = vadd.f32 %v234, %v260
    %262 = vmatmul.f32.gmra.mxu0 %v241
    %v263 = vpop.f32.mrf.mxu0
    %v264 = vadd.f32 %v234, %v263
    %265 = vdwg.mxu0
    %vm266 = vcmask 130048
    %v268 = vsel %vm266, %v141, 0
    %v271 = vsel %vm266, %v142, 0
    %v274 = vsel %vm266, %v143, 0
    %v277 = vsel %vm266, %v144, 0
    %v280 = vsel %vm266, %v145, 0
    %282 = vmatpush.msra.mxu0 0.0
    %283 = vmatpush.msra.mxu0 0.0
    %284 = vmatpush.msra.mxu0 0.0
    %285 = vmatpush.msra.mxu0 0.0
    %286 = vmatpush.msra.mxu0 0.0
    %287 = vmatpush.msra.mxu0 0.0
    %288 = vmatpush.msra.mxu0 0.0
    %289 = vmatpush.msra.mxu0 0.0
    %290 = vmatpush.msra.mxu0 0.0
    %291 = vmatpush.msra.mxu0 0.0
    %292 = vmatpush.msra.mxu0 0.0
    %293 = vmatpush.msra.mxu0 0.0
    %294 = vmatpush.msra.mxu0 0.0
    %295 = vmatpush.msra.mxu0 0.0
    %296 = vmatpush.msra.mxu0 %v264
    %297 = vmatpush.msra.mxu0 %v261
    %298 = vmatmul.f32.gmra.mxu0 %v268
    %v299 = vpop.f32.mrf.mxu0
    %v300 = vadd.f32 0.0, %v299
    %301 = vmatmul.f32.gmra.mxu0 %v271
    %v302 = vpop.f32.mrf.mxu0
    %v303 = vadd.f32 0.0, %v302
    %304 = vmatmul.f32.gmra.mxu0 %v274
    %v305 = vpop.f32.mrf.mxu0
    %v306 = vadd.f32 0.0, %v305
    %307 = vmatmul.f32.gmra.mxu0 %v277
    %v308 = vpop.f32.mrf.mxu0
    %v309 = vadd.f32 0.0, %v308
    %310 = vmatmul.f32.gmra.mxu0 %v280
    %v311 = vpop.f32.mrf.mxu0
    %v312 = vadd.f32 0.0, %v311
    %313 = vdwg.mxu0
    %v314 = vld [vmem:[%s12] sm:$0xff]
    %v315 = vld [vmem:[%s12 + $0x8] sm:$0xff]
    %v317 = vsel %vm266, %v209, 0
    %v320 = vsel %vm266, %v212, 0
    %v323 = vsel %vm266, %v215, 0
    %v326 = vsel %vm266, %v218, 0
    %v329 = vsel %vm266, %v221, 0
    %331 = vmatpush.msra.mxu0 0.0
    %332 = vmatpush.msra.mxu0 0.0
    %333 = vmatpush.msra.mxu0 0.0
    %334 = vmatpush.msra.mxu0 0.0
    %335 = vmatpush.msra.mxu0 0.0
    %336 = vmatpush.msra.mxu0 0.0
    %337 = vmatpush.msra.mxu0 0.0
    %338 = vmatpush.msra.mxu0 0.0
    %339 = vmatpush.msra.mxu0 0.0
    %340 = vmatpush.msra.mxu0 0.0
    %341 = vmatpush.msra.mxu0 0.0
    %342 = vmatpush.msra.mxu0 0.0
    %343 = vmatpush.msra.mxu0 0.0
    %344 = vmatpush.msra.mxu0 0.0
    %345 = vmatpush.msra.mxu0 %v315
    %346 = vmatpush.msra.mxu0 %v314
    %347 = vmatmul.f32.gmra.mxu0 %v317
    %v348 = vpop.f32.mrf.mxu0
    %v349 = vadd.f32 0.0, %v348
    %350 = vmatmul.f32.gmra.mxu0 %v320
    %v351 = vpop.f32.mrf.mxu0
    %v352 = vadd.f32 0.0, %v351
    %353 = vmatmul.f32.gmra.mxu0 %v323
    %v354 = vpop.f32.mrf.mxu0
    %v355 = vadd.f32 0.0, %v354
    %356 = vmatmul.f32.gmra.mxu0 %v326
    %v357 = vpop.f32.mrf.mxu0
    %v358 = vadd.f32 0.0, %v357
    %359 = vmatmul.f32.gmra.mxu0 %v329
    %v360 = vpop.f32.mrf.mxu0
    %v361 = vadd.f32 0.0, %v360
    %362 = vdwg.mxu0
    %365 = vrot.lane.b32.xlu0 %v261, 64
    %v366 = vpop.permute.xlu0 %365
    %367 = vrot.lane.b32.xlu0 %v264, 64
    %v368 = vpop.permute.xlu0 %367
    %v372 = vsel %vm266, %v151, 0
    %v375 = vsel %vm266, %v152, 0
    %v378 = vsel %vm266, %v153, 0
    %v381 = vsel %vm266, %v154, 0
    %v384 = vsel %vm266, %v155, 0
    %386 = vmatpush.msra.mxu0 0.0
    %387 = vmatpush.msra.mxu0 0.0
    %388 = vmatpush.msra.mxu0 0.0
    %389 = vmatpush.msra.mxu0 0.0
    %390 = vmatpush.msra.mxu0 0.0
    %391 = vmatpush.msra.mxu0 0.0
    %392 = vmatpush.msra.mxu0 0.0
    %393 = vmatpush.msra.mxu0 0.0
    %394 = vmatpush.msra.mxu0 0.0
    %395 = vmatpush.msra.mxu0 0.0
    %396 = vmatpush.msra.mxu0 0.0
    %397 = vmatpush.msra.mxu0 0.0
    %398 = vmatpush.msra.mxu0 0.0
    %399 = vmatpush.msra.mxu0 0.0
    %400 = vmatpush.msra.mxu0 %v368
    %401 = vmatpush.msra.mxu0 %v366
    %402 = vmatmul.f32.gmra.mxu0 %v372
    %v403 = vpop.f32.mrf.mxu0
    %v404 = vadd.f32 %v300, %v403
    %405 = vmatmul.f32.gmra.mxu0 %v375
    %v406 = vpop.f32.mrf.mxu0
    %v407 = vadd.f32 %v303, %v406
    %408 = vmatmul.f32.gmra.mxu0 %v378
    %v409 = vpop.f32.mrf.mxu0
    %v410 = vadd.f32 %v306, %v409
    %411 = vmatmul.f32.gmra.mxu0 %v381
    %v412 = vpop.f32.mrf.mxu0
    %v413 = vadd.f32 %v309, %v412
    %414 = vmatmul.f32.gmra.mxu0 %v384
    %v415 = vpop.f32.mrf.mxu0
    %v416 = vadd.f32 %v312, %v415
    %417 = vdwg.mxu0
    %v418 = vadd.f32 %v404, %v349
    %v419 = vadd.f32 %v407, %v352
    %v420 = vadd.f32 %v410, %v355
    %v421 = vadd.f32 %v413, %v358
    %v422 = vadd.f32 %v416, %v361
    %vm423 = vcmp.gt.f32.partialorder %v418, 0.0
    %vm424 = vcmp.gt.f32.partialorder %v419, 0.0
    %vm425 = vcmp.gt.f32.partialorder %v420, 0.0
    %vm426 = vcmp.gt.f32.partialorder %v421, 0.0
    %vm427 = vcmp.gt.f32.partialorder %v422, 0.0
    %v428 = vmul.f32 %v418, 0.2
    %v429 = vmul.f32 %v419, 0.2
    %v430 = vmul.f32 %v420, 0.2
    %v431 = vmul.f32 %v421, 0.2
    %v432 = vmul.f32 %v422, 0.2
    %v433 = vsel %vm423, %v418, %v428
    %v434 = vsel %vm424, %v419, %v429
    %v435 = vsel %vm425, %v420, %v430
    %v436 = vsel %vm426, %v421, %v431
    %v437 = vsel %vm427, %v422, %v432
    %v438 = vld [vmem:[%s13] sm:$0xff]
    %v439 = vld [vmem:[%s13 + $0x8] sm:$0xff]
    %v440 = vld [vmem:[%s13 + $0x10] sm:$0xff]
    %v441 = vld [vmem:[%s13 + $0x18] sm:$0xff]
    %v442 = vld [vmem:[%s13 + $0x20] sm:$0xff]
    %v443 = vld [vmem:[%s13 + $0x28] sm:$0xff]
    %v444 = vld [vmem:[%s13 + $0x30] sm:$0xff]
    %v445 = vld [vmem:[%s13 + $0x38] sm:$0xff]
    %vm446 = vcmask 523264
    %v448 = vsel %vm446, %v433, 0
    %v451 = vsel %vm446, %v434, 0
    %v454 = vsel %vm446, %v435, 0
    %v457 = vsel %vm446, %v436, 0
    %v460 = vsel %vm446, %v437, 0
    %462 = vmatpush.msra.mxu0 0.0
    %463 = vmatpush.msra.mxu0 0.0
    %464 = vmatpush.msra.mxu0 0.0
    %465 = vmatpush.msra.mxu0 0.0
    %466 = vmatpush.msra.mxu0 0.0
    %467 = vmatpush.msra.mxu0 0.0
    %468 = vmatpush.msra.mxu0 0.0
    %469 = vmatpush.msra.mxu0 0.0
    %470 = vmatpush.msra.mxu0 %v445
    %471 = vmatpush.msra.mxu0 %v444
    %472 = vmatpush.msra.mxu0 %v443
    %473 = vmatpush.msra.mxu0 %v442
    %474 = vmatpush.msra.mxu0 %v441
    %475 = vmatpush.msra.mxu0 %v440
    %476 = vmatpush.msra.mxu0 %v439
    %477 = vmatpush.msra.mxu0 %v438
    %478 = vmatmul.f32.gmra.mxu0 %v448
    %v479 = vpop.f32.mrf.mxu0
    %v480 = vadd.f32 0.0, %v479
    %481 = vmatmul.f32.gmra.mxu0 %v451
    %v482 = vpop.f32.mrf.mxu0
    %v483 = vadd.f32 0.0, %v482
    %484 = vmatmul.f32.gmra.mxu0 %v454
    %v485 = vpop.f32.mrf.mxu0
    %v486 = vadd.f32 0.0, %v485
    %487 = vmatmul.f32.gmra.mxu0 %v457
    %v488 = vpop.f32.mrf.mxu0
    %v489 = vadd.f32 0.0, %v488
    %490 = vmatmul.f32.gmra.mxu0 %v460
    %v491 = vpop.f32.mrf.mxu0
    %v492 = vadd.f32 0.0, %v491
    %493 = vdwg.mxu0
    %vm494 = vcmp.gt.f32.partialorder %v151, 0.0
    %vm495 = vcmp.gt.f32.partialorder %v152, 0.0
    %vm496 = vcmp.gt.f32.partialorder %v153, 0.0
    %vm497 = vcmp.gt.f32.partialorder %v154, 0.0
    %vm498 = vcmp.gt.f32.partialorder %v155, 0.0
    %500 = vset.pattern.permute.xlu0 0
    %501 = vperm.xlu0 %500, %v480
    %v502 = vpop.permute.xlu0 %501
    %505 = vset.pattern.permute.xlu0 0
    %506 = vperm.xlu0 %505, %v483
    %v507 = vpop.permute.xlu0 %506
    %510 = vset.pattern.permute.xlu0 0
    %511 = vperm.xlu0 %510, %v486
    %v512 = vpop.permute.xlu0 %511
    %515 = vset.pattern.permute.xlu0 0
    %516 = vperm.xlu0 %515, %v489
    %v517 = vpop.permute.xlu0 %516
    %520 = vset.pattern.permute.xlu0 0
    %521 = vperm.xlu0 %520, %v492
    %v522 = vpop.permute.xlu0 %521
    %v524 = vsel %vm494, %v502, -1e+30
    %v525 = vsel %vm495, %v507, -1e+30
    %v526 = vsel %vm496, %v512, -1e+30
    %v527 = vsel %vm497, %v517, -1e+30
    %v528 = vsel %vm498, %v522, -1e+30
    %v529 = vsel %vm266, %v524, -inf
    %v530 = vsel %vm266, %v525, -inf
    %v531 = vsel %vm266, %v526, -inf
    %v532 = vsel %vm266, %v527, -inf
    %v533 = vsel %vm266, %v528, -inf
    %v534 = vmax.f32 %v529, %v533
    %v535 = vmax.f32 %v534, %v530
    %v536 = vmax.f32 %v531, %v532
    %v537 = vmax.f32 %v535, %v536
    %v538 = vrot.slane %v537, 4
    %v539 = vmax.f32 %v537, %v538
    %v540 = vrot.slane %v539, 2
    %v541 = vmax.f32 %v539, %v540
    %v542 = vrot.slane %v541, 1
    %v543 = vmax.f32 %v541, %v542
    %v544 = vmul.f32 %v151, %v543
    %v545 = vmul.f32 %v152, %v543
    %v546 = vmul.f32 %v153, %v543
    %v547 = vmul.f32 %v154, %v543
    %v548 = vmul.f32 %v155, %v543
    %v549 = vsel %vm266, %v544, 0.0
    %550 = vadd.xlane.f32.xlu0 %v549
    %v551 = vpop.xlane.xlu0 %550
    %v552 = vsel %vm266, %v545, 0.0
    %553 = vadd.xlane.f32.xlu0 %v552
    %v554 = vpop.xlane.xlu0 %553
    %v555 = vsel %vm266, %v546, 0.0
    %556 = vadd.xlane.f32.xlu0 %v555
    %v557 = vpop.xlane.xlu0 %556
    %v558 = vsel %vm266, %v547, 0.0
    %559 = vadd.xlane.f32.xlu0 %v558
    %v560 = vpop.xlane.xlu0 %559
    %v561 = vsel %vm266, %v548, 0.0
    %562 = vadd.xlane.f32.xlu0 %v561
    %v563 = vpop.xlane.xlu0 %562
    %v564 = vsub.f32 %v480, %v551
    %v565 = vsub.f32 %v483, %v554
    %v566 = vsub.f32 %v486, %v557
    %v567 = vsub.f32 %v489, %v560
    %v568 = vsub.f32 %v492, %v563
    %v569 = vmul.f32 %v564, 1.442695
    %v570 = vpow.pop %v569
    %v571 = vmul.f32 %v565, 1.442695
    %v572 = vpow.pop %v571
    %v573 = vmul.f32 %v566, 1.442695
    %v574 = vpow.pop %v573
    %v575 = vmul.f32 %v567, 1.442695
    %v576 = vpow.pop %v575
    %v577 = vmul.f32 %v568, 1.442695
    %v578 = vpow.pop %v577
    %v579 = vmul.f32 %v570, %v160
    %v580 = vmul.f32 %v572, %v161
    %v581 = vmul.f32 %v574, %v162
    %v582 = vmul.f32 %v576, %v163
    %v583 = vmul.f32 %v578, %v164
    %vm584 = vcmask 326656
    %v586 = vsel %vm584, %v158, 0
    %v589 = vsel %vm584, %v159, 0
    %591 = vmatpush.msra.mxu0 0.0
    %592 = vmatpush.msra.mxu0 0.0
    %593 = vmatpush.msra.mxu0 0.0
    %594 = vmatpush.msra.mxu0 0.0
    %595 = vmatpush.msra.mxu0 0.0
    %596 = vmatpush.msra.mxu0 0.0
    %597 = vmatpush.msra.mxu0 0.0
    %598 = vmatpush.msra.mxu0 0.0
    %599 = vmatpush.msra.mxu0 0.0
    %600 = vmatpush.msra.mxu0 0.0
    %601 = vmatpush.msra.mxu0 0.0
    %602 = vmatpush.msra.mxu0 %v583
    %603 = vmatpush.msra.mxu0 %v582
    %604 = vmatpush.msra.mxu0 %v581
    %605 = vmatpush.msra.mxu0 %v580
    %606 = vmatpush.msra.mxu0 %v579
    %607 = vmatmul.f32.gmra.mxu0 %v586
    %v608 = vpop.f32.mrf.mxu0
    %v609 = vadd.f32 0.0, %v608
    %610 = vmatmul.f32.gmra.mxu0 %v589
    %v611 = vpop.f32.mrf.mxu0
    %v612 = vadd.f32 0.0, %v611
    %613 = vdwg.mxu0
    %v614 = vsub.f32 1.0, %v160
    %v615 = vsub.f32 1.0, %v161
    %v616 = vsub.f32 1.0, %v162
    %v617 = vsub.f32 1.0, %v163
    %v618 = vsub.f32 1.0, %v164
    %619 = vmatpush.msra.mxu0 0.0
    %620 = vmatpush.msra.mxu0 0.0
    %621 = vmatpush.msra.mxu0 0.0
    %622 = vmatpush.msra.mxu0 0.0
    %623 = vmatpush.msra.mxu0 0.0
    %624 = vmatpush.msra.mxu0 0.0
    %625 = vmatpush.msra.mxu0 0.0
    %626 = vmatpush.msra.mxu0 0.0
    %627 = vmatpush.msra.mxu0 0.0
    %628 = vmatpush.msra.mxu0 0.0
    %629 = vmatpush.msra.mxu0 0.0
    %630 = vmatpush.msra.mxu0 0.0
    %631 = vmatpush.msra.mxu0 0.0
    %632 = vmatpush.msra.mxu0 0.0
    %633 = vmatpush.msra.mxu0 %v612
    %634 = vmatpush.msra.mxu0 %v609
    %635 = vmatmul.f32.gmra.mxu0 %v372
    %v636 = vpop.f32.mrf.mxu0
    %v637 = vadd.f32 %v614, %v636
    %638 = vmatmul.f32.gmra.mxu0 %v375
    %v639 = vpop.f32.mrf.mxu0
    %v640 = vadd.f32 %v615, %v639
    %641 = vmatmul.f32.gmra.mxu0 %v378
    %v642 = vpop.f32.mrf.mxu0
    %v643 = vadd.f32 %v616, %v642
    %644 = vmatmul.f32.gmra.mxu0 %v381
    %v645 = vpop.f32.mrf.mxu0
    %v646 = vadd.f32 %v617, %v645
    %647 = vmatmul.f32.gmra.mxu0 %v384
    %v648 = vpop.f32.mrf.mxu0
    %v649 = vadd.f32 %v618, %v648
    %650 = vdwg.mxu0
    %v651 = vrcp.pop %v637
    %v652 = vrcp.pop %v640
    %v653 = vrcp.pop %v643
    %v654 = vrcp.pop %v646
    %v655 = vrcp.pop %v649
    %v656 = vmul.f32 %v579, %v651
    %v657 = vmul.f32 %v580, %v652
    %v658 = vmul.f32 %v581, %v653
    %v659 = vmul.f32 %v582, %v654
    %v660 = vmul.f32 %v583, %v655
    %662 = vset.pattern.permute.xlu0 0
    %663 = vperm.xlu0 %662, %v656
    %v664 = vpop.permute.xlu0 %663
    %667 = vset.pattern.permute.xlu0 0
    %668 = vperm.xlu0 %667, %v657
    %v669 = vpop.permute.xlu0 %668
    %672 = vset.pattern.permute.xlu0 0
    %673 = vperm.xlu0 %672, %v658
    %v674 = vpop.permute.xlu0 %673
    %677 = vset.pattern.permute.xlu0 0
    %678 = vperm.xlu0 %677, %v659
    %v679 = vpop.permute.xlu0 %678
    %682 = vset.pattern.permute.xlu0 0
    %683 = vperm.xlu0 %682, %v660
    %v684 = vpop.permute.xlu0 %683
    %v686 = vmul.f32 %v664, %v300
    %v687 = vmul.f32 %v669, %v303
    %v688 = vmul.f32 %v674, %v306
    %v689 = vmul.f32 %v679, %v309
    %v690 = vmul.f32 %v684, %v312
    %691 = vset.pattern.permute.xlu0 1
    %692 = vperm.xlu0 %691, %v480
    %v693 = vpop.permute.xlu0 %692
    %695 = vset.pattern.permute.xlu0 1
    %696 = vperm.xlu0 %695, %v483
    %v697 = vpop.permute.xlu0 %696
    %699 = vset.pattern.permute.xlu0 1
    %700 = vperm.xlu0 %699, %v486
    %v701 = vpop.permute.xlu0 %700
    %703 = vset.pattern.permute.xlu0 1
    %704 = vperm.xlu0 %703, %v489
    %v705 = vpop.permute.xlu0 %704
    %707 = vset.pattern.permute.xlu0 1
    %708 = vperm.xlu0 %707, %v492
    %v709 = vpop.permute.xlu0 %708
    %v711 = vsel %vm494, %v693, -1e+30
    %v712 = vsel %vm495, %v697, -1e+30
    %v713 = vsel %vm496, %v701, -1e+30
    %v714 = vsel %vm497, %v705, -1e+30
    %v715 = vsel %vm498, %v709, -1e+30
    %v716 = vsel %vm266, %v711, -inf
    %v717 = vsel %vm266, %v712, -inf
    %v718 = vsel %vm266, %v713, -inf
    %v719 = vsel %vm266, %v714, -inf
    %v720 = vsel %vm266, %v715, -inf
    %v721 = vmax.f32 %v716, %v720
    %v722 = vmax.f32 %v721, %v717
    %v723 = vmax.f32 %v718, %v719
    %v724 = vmax.f32 %v722, %v723
    %v725 = vrot.slane %v724, 4
    %v726 = vmax.f32 %v724, %v725
    %v727 = vrot.slane %v726, 2
    %v728 = vmax.f32 %v726, %v727
    %v729 = vrot.slane %v728, 1
    %v730 = vmax.f32 %v728, %v729
    %v731 = vmul.f32 %v151, %v730
    %v732 = vmul.f32 %v152, %v730
    %v733 = vmul.f32 %v153, %v730
    %v734 = vmul.f32 %v154, %v730
    %v735 = vmul.f32 %v155, %v730
    %v736 = vsel %vm266, %v731, 0.0
    %737 = vadd.xlane.f32.xlu0 %v736
    %v738 = vpop.xlane.xlu0 %737
    %v739 = vsel %vm266, %v732, 0.0
    %740 = vadd.xlane.f32.xlu0 %v739
    %v741 = vpop.xlane.xlu0 %740
    %v742 = vsel %vm266, %v733, 0.0
    %743 = vadd.xlane.f32.xlu0 %v742
    %v744 = vpop.xlane.xlu0 %743
    %v745 = vsel %vm266, %v734, 0.0
    %746 = vadd.xlane.f32.xlu0 %v745
    %v747 = vpop.xlane.xlu0 %746
    %v748 = vsel %vm266, %v735, 0.0
    %749 = vadd.xlane.f32.xlu0 %v748
    %v750 = vpop.xlane.xlu0 %749
    %v751 = vsub.f32 %v480, %v738
    %v752 = vsub.f32 %v483, %v741
    %v753 = vsub.f32 %v486, %v744
    %v754 = vsub.f32 %v489, %v747
    %v755 = vsub.f32 %v492, %v750
    %v756 = vmul.f32 %v751, 1.442695
    %v757 = vpow.pop %v756
    %v758 = vmul.f32 %v752, 1.442695
    %v759 = vpow.pop %v758
    %v760 = vmul.f32 %v753, 1.442695
    %v761 = vpow.pop %v760
    %v762 = vmul.f32 %v754, 1.442695
    %v763 = vpow.pop %v762
    %v764 = vmul.f32 %v755, 1.442695
    %v765 = vpow.pop %v764
    %771 = vrot.lane.b32.xlu0 %v160, 1
    %v772 = vpop.permute.xlu0 %771
    %773 = vrot.lane.b32.xlu0 %v161, 1
    %v774 = vpop.permute.xlu0 %773
    %775 = vrot.lane.b32.xlu0 %v162, 1
    %v776 = vpop.permute.xlu0 %775
    %777 = vrot.lane.b32.xlu0 %v163, 1
    %v778 = vpop.permute.xlu0 %777
    %779 = vrot.lane.b32.xlu0 %v164, 1
    %v780 = vpop.permute.xlu0 %779
    %v786 = vmul.f32 %v757, %v772
    %v787 = vmul.f32 %v759, %v774
    %v788 = vmul.f32 %v761, %v776
    %v789 = vmul.f32 %v763, %v778
    %v790 = vmul.f32 %v765, %v780
    %796 = vrot.lane.b32.xlu0 %v786, 127
    %v797 = vpop.permute.xlu0 %796
    %798 = vrot.lane.b32.xlu0 %v787, 127
    %v799 = vpop.permute.xlu0 %798
    %800 = vrot.lane.b32.xlu0 %v788, 127
    %v801 = vpop.permute.xlu0 %800
    %802 = vrot.lane.b32.xlu0 %v789, 127
    %v803 = vpop.permute.xlu0 %802
    %804 = vrot.lane.b32.xlu0 %v790, 127
    %v805 = vpop.permute.xlu0 %804
    %811 = vmatpush.msra.mxu0 0.0
    %812 = vmatpush.msra.mxu0 0.0
    %813 = vmatpush.msra.mxu0 0.0
    %814 = vmatpush.msra.mxu0 0.0
    %815 = vmatpush.msra.mxu0 0.0
    %816 = vmatpush.msra.mxu0 0.0
    %817 = vmatpush.msra.mxu0 0.0
    %818 = vmatpush.msra.mxu0 0.0
    %819 = vmatpush.msra.mxu0 0.0
    %820 = vmatpush.msra.mxu0 0.0
    %821 = vmatpush.msra.mxu0 0.0
    %822 = vmatpush.msra.mxu0 %v805
    %823 = vmatpush.msra.mxu0 %v803
    %824 = vmatpush.msra.mxu0 %v801
    %825 = vmatpush.msra.mxu0 %v799
    %826 = vmatpush.msra.mxu0 %v797
    %827 = vmatmul.f32.gmra.mxu0 %v586
    %v828 = vpop.f32.mrf.mxu0
    %v829 = vadd.f32 0.0, %v828
    %830 = vmatmul.f32.gmra.mxu0 %v589
    %v831 = vpop.f32.mrf.mxu0
    %v832 = vadd.f32 0.0, %v831
    %833 = vdwg.mxu0
    %834 = vmatpush.msra.mxu0 0.0
    %835 = vmatpush.msra.mxu0 0.0
    %836 = vmatpush.msra.mxu0 0.0
    %837 = vmatpush.msra.mxu0 0.0
    %838 = vmatpush.msra.mxu0 0.0
    %839 = vmatpush.msra.mxu0 0.0
    %840 = vmatpush.msra.mxu0 0.0
    %841 = vmatpush.msra.mxu0 0.0
    %842 = vmatpush.msra.mxu0 0.0
    %843 = vmatpush.msra.mxu0 0.0
    %844 = vmatpush.msra.mxu0 0.0
    %845 = vmatpush.msra.mxu0 0.0
    %846 = vmatpush.msra.mxu0 0.0
    %847 = vmatpush.msra.mxu0 0.0
    %848 = vmatpush.msra.mxu0 %v832
    %849 = vmatpush.msra.mxu0 %v829
    %850 = vmatmul.f32.gmra.mxu0 %v372
    %v851 = vpop.f32.mrf.mxu0
    %v852 = vadd.f32 %v614, %v851
    %853 = vmatmul.f32.gmra.mxu0 %v375
    %v854 = vpop.f32.mrf.mxu0
    %v855 = vadd.f32 %v615, %v854
    %856 = vmatmul.f32.gmra.mxu0 %v378
    %v857 = vpop.f32.mrf.mxu0
    %v858 = vadd.f32 %v616, %v857
    %859 = vmatmul.f32.gmra.mxu0 %v381
    %v860 = vpop.f32.mrf.mxu0
    %v861 = vadd.f32 %v617, %v860
    %862 = vmatmul.f32.gmra.mxu0 %v384
    %v863 = vpop.f32.mrf.mxu0
    %v864 = vadd.f32 %v618, %v863
    %865 = vdwg.mxu0
    %v866 = vrcp.pop %v852
    %v867 = vrcp.pop %v855
    %v868 = vrcp.pop %v858
    %v869 = vrcp.pop %v861
    %v870 = vrcp.pop %v864
    %876 = vrot.lane.b32.xlu0 %v866, 1
    %v877 = vpop.permute.xlu0 %876
    %878 = vrot.lane.b32.xlu0 %v867, 1
    %v879 = vpop.permute.xlu0 %878
    %880 = vrot.lane.b32.xlu0 %v868, 1
    %v881 = vpop.permute.xlu0 %880
    %882 = vrot.lane.b32.xlu0 %v869, 1
    %v883 = vpop.permute.xlu0 %882
    %884 = vrot.lane.b32.xlu0 %v870, 1
    %v885 = vpop.permute.xlu0 %884
    %v891 = vmul.f32 %v786, %v877
    %v892 = vmul.f32 %v787, %v879
    %v893 = vmul.f32 %v788, %v881
    %v894 = vmul.f32 %v789, %v883
    %v895 = vmul.f32 %v790, %v885
    %897 = vset.pattern.permute.xlu0 1
    %898 = vperm.xlu0 %897, %v891
    %v899 = vpop.permute.xlu0 %898
    %902 = vset.pattern.permute.xlu0 1
    %903 = vperm.xlu0 %902, %v892
    %v904 = vpop.permute.xlu0 %903
    %907 = vset.pattern.permute.xlu0 1
    %908 = vperm.xlu0 %907, %v893
    %v909 = vpop.permute.xlu0 %908
    %912 = vset.pattern.permute.xlu0 1
    %913 = vperm.xlu0 %912, %v894
    %v914 = vpop.permute.xlu0 %913
    %917 = vset.pattern.permute.xlu0 1
    %918 = vperm.xlu0 %917, %v895
    %v919 = vpop.permute.xlu0 %918
    %v921 = vmul.f32 %v899, %v300
    %v922 = vmul.f32 %v904, %v303
    %v923 = vmul.f32 %v909, %v306
    %v924 = vmul.f32 %v914, %v309
    %v925 = vmul.f32 %v919, %v312
    %931 = vrot.lane.b32.xlu0 %v921, 96
    %v932 = vpop.permute.xlu0 %931
    %933 = vrot.lane.b32.xlu0 %v922, 96
    %v934 = vpop.permute.xlu0 %933
    %935 = vrot.lane.b32.xlu0 %v923, 96
    %v936 = vpop.permute.xlu0 %935
    %937 = vrot.lane.b32.xlu0 %v924, 96
    %v938 = vpop.permute.xlu0 %937
    %939 = vrot.lane.b32.xlu0 %v925, 96
    %v940 = vpop.permute.xlu0 %939
    %946 = vmatpush.msra.mxu0 0.0
    %947 = vmatpush.msra.mxu0 0.0
    %948 = vmatpush.msra.mxu0 0.0
    %949 = vmatpush.msra.mxu0 0.0
    %950 = vmatpush.msra.mxu0 0.0
    %951 = vmatpush.msra.mxu0 0.0
    %952 = vmatpush.msra.mxu0 0.0
    %953 = vmatpush.msra.mxu0 0.0
    %954 = vmatpush.msra.mxu0 0.0
    %955 = vmatpush.msra.mxu0 0.0
    %956 = vmatpush.msra.mxu0 0.0
    %957 = vmatpush.msra.mxu0 %v940
    %958 = vmatpush.msra.mxu0 %v938
    %959 = vmatpush.msra.mxu0 %v936
    %960 = vmatpush.msra.mxu0 %v934
    %961 = vmatpush.msra.mxu0 %v932
    %962 = vmatmul.f32.gmra.mxu0 %v586
    %v963 = vpop.f32.mrf.mxu0
    %v964 = vadd.f32 0.0, %v963
    %965 = vmatmul.f32.gmra.mxu0 %v589
    %v966 = vpop.f32.mrf.mxu0
    %v967 = vadd.f32 0.0, %v966
    %968 = vdwg.mxu0
    %969 = vmatpush.msra.mxu0 0.0
    %970 = vmatpush.msra.mxu0 0.0
    %971 = vmatpush.msra.mxu0 0.0
    %972 = vmatpush.msra.mxu0 0.0
    %973 = vmatpush.msra.mxu0 0.0
    %974 = vmatpush.msra.mxu0 0.0
    %975 = vmatpush.msra.mxu0 0.0
    %976 = vmatpush.msra.mxu0 0.0
    %977 = vmatpush.msra.mxu0 0.0
    %978 = vmatpush.msra.mxu0 0.0
    %979 = vmatpush.msra.mxu0 0.0
    %980 = vmatpush.msra.mxu0 %v690
    %981 = vmatpush.msra.mxu0 %v689
    %982 = vmatpush.msra.mxu0 %v688
    %983 = vmatpush.msra.mxu0 %v687
    %984 = vmatpush.msra.mxu0 %v686
    %985 = vmatmul.f32.gmra.mxu0 %v586
    %v986 = vpop.f32.mrf.mxu0
    %v987 = vadd.f32 %v964, %v986
    %988 = vmatmul.f32.gmra.mxu0 %v589
    %v989 = vpop.f32.mrf.mxu0
    %v990 = vadd.f32 %v967, %v989
    %991 = vdwg.mxu0
    %v992 = vmul.f32 %v987, 0.5
    %v993 = vmul.f32 %v990, 0.5
    %v994 = vld [vmem:[%s14] sm:$0x1]
    %v996 = vperm.slane %v994, 0
    %v998 = vadd.f32 %v992, %v996
    %v999 = vadd.f32 %v993, %v996
    %v1000 = vmax.f32 %v998, 0.0
    %v1001 = vmax.f32 %v999, 0.0
    %v1002 = vld [vmem:[%s15] sm:$0xff]
    %v1003 = vld [vmem:[%s15 + $0x8] sm:$0xff]
    %v1004 = vld [vmem:[%s15 + $0x10] sm:$0xff]
    %v1005 = vld [vmem:[%s15 + $0x18] sm:$0xff]
    %v1006 = vld [vmem:[%s16] sm:$0x1]
    %v1008 = vperm.slane %v1006, 0
    %v1011 = vsel %vm236, %v1000, 0
    %v1014 = vsel %vm236, %v1001, 0
    %1016 = vmatpush.msra.mxu0 0.0
    %1017 = vmatpush.msra.mxu0 0.0
    %1018 = vmatpush.msra.mxu0 0.0
    %1019 = vmatpush.msra.mxu0 0.0
    %1020 = vmatpush.msra.mxu0 0.0
    %1021 = vmatpush.msra.mxu0 0.0
    %1022 = vmatpush.msra.mxu0 0.0
    %1023 = vmatpush.msra.mxu0 0.0
    %1024 = vmatpush.msra.mxu0 0.0
    %1025 = vmatpush.msra.mxu0 0.0
    %1026 = vmatpush.msra.mxu0 0.0
    %1027 = vmatpush.msra.mxu0 0.0
    %1028 = vmatpush.msra.mxu0 %v1005
    %1029 = vmatpush.msra.mxu0 %v1004
    %1030 = vmatpush.msra.mxu0 %v1003
    %1031 = vmatpush.msra.mxu0 %v1002
    %1032 = vmatmul.f32.gmra.mxu0 %v1011
    %v1033 = vpop.f32.mrf.mxu0
    %v1034 = vadd.f32 %v1008, %v1033
    %1035 = vmatmul.f32.gmra.mxu0 %v1014
    %v1036 = vpop.f32.mrf.mxu0
    %v1037 = vadd.f32 %v1008, %v1036
    %1038 = vdwg.mxu0
    %1039 = vmatpush.msra.mxu0 0.0
    %1040 = vmatpush.msra.mxu0 0.0
    %1041 = vmatpush.msra.mxu0 0.0
    %1042 = vmatpush.msra.mxu0 0.0
    %1043 = vmatpush.msra.mxu0 0.0
    %1044 = vmatpush.msra.mxu0 0.0
    %1045 = vmatpush.msra.mxu0 0.0
    %1046 = vmatpush.msra.mxu0 0.0
    %1047 = vmatpush.msra.mxu0 0.0
    %1048 = vmatpush.msra.mxu0 0.0
    %1049 = vmatpush.msra.mxu0 0.0
    %1050 = vmatpush.msra.mxu0 0.0
    %1051 = vmatpush.msra.mxu0 0.0
    %1052 = vmatpush.msra.mxu0 0.0
    %1053 = vmatpush.msra.mxu0 %v1037
    %1054 = vmatpush.msra.mxu0 %v1034
    %1055 = vmatmul.f32.gmra.mxu0 %v268
    %v1056 = vpop.f32.mrf.mxu0
    %v1057 = vadd.f32 0.0, %v1056
    %1058 = vmatmul.f32.gmra.mxu0 %v271
    %v1059 = vpop.f32.mrf.mxu0
    %v1060 = vadd.f32 0.0, %v1059
    %1061 = vmatmul.f32.gmra.mxu0 %v274
    %v1062 = vpop.f32.mrf.mxu0
    %v1063 = vadd.f32 0.0, %v1062
    %1064 = vmatmul.f32.gmra.mxu0 %v277
    %v1065 = vpop.f32.mrf.mxu0
    %v1066 = vadd.f32 0.0, %v1065
    %1067 = vmatmul.f32.gmra.mxu0 %v280
    %v1068 = vpop.f32.mrf.mxu0
    %v1069 = vadd.f32 0.0, %v1068
    %1070 = vdwg.mxu0
    %v1071 = vld [vmem:[%s17] sm:$0xff]
    %v1072 = vld [vmem:[%s17 + $0x8] sm:$0xff]
    %v1074 = vsel %vm266, %v223, 0
    %v1077 = vsel %vm266, %v224, 0
    %v1080 = vsel %vm266, %v225, 0
    %v1083 = vsel %vm266, %v226, 0
    %v1086 = vsel %vm266, %v227, 0
    %1088 = vmatpush.msra.mxu0 0.0
    %1089 = vmatpush.msra.mxu0 0.0
    %1090 = vmatpush.msra.mxu0 0.0
    %1091 = vmatpush.msra.mxu0 0.0
    %1092 = vmatpush.msra.mxu0 0.0
    %1093 = vmatpush.msra.mxu0 0.0
    %1094 = vmatpush.msra.mxu0 0.0
    %1095 = vmatpush.msra.mxu0 0.0
    %1096 = vmatpush.msra.mxu0 0.0
    %1097 = vmatpush.msra.mxu0 0.0
    %1098 = vmatpush.msra.mxu0 0.0
    %1099 = vmatpush.msra.mxu0 0.0
    %1100 = vmatpush.msra.mxu0 0.0
    %1101 = vmatpush.msra.mxu0 0.0
    %1102 = vmatpush.msra.mxu0 %v1072
    %1103 = vmatpush.msra.mxu0 %v1071
    %1104 = vmatmul.f32.gmra.mxu0 %v1074
    %v1105 = vpop.f32.mrf.mxu0
    %v1106 = vadd.f32 0.0, %v1105
    %1107 = vmatmul.f32.gmra.mxu0 %v1077
    %v1108 = vpop.f32.mrf.mxu0
    %v1109 = vadd.f32 0.0, %v1108
    %1110 = vmatmul.f32.gmra.mxu0 %v1080
    %v1111 = vpop.f32.mrf.mxu0
    %v1112 = vadd.f32 0.0, %v1111
    %1113 = vmatmul.f32.gmra.mxu0 %v1083
    %v1114 = vpop.f32.mrf.mxu0
    %v1115 = vadd.f32 0.0, %v1114
    %1116 = vmatmul.f32.gmra.mxu0 %v1086
    %v1117 = vpop.f32.mrf.mxu0
    %v1118 = vadd.f32 0.0, %v1117
    %1119 = vdwg.mxu0
    %1122 = vrot.lane.b32.xlu0 %v1034, 64
    %v1123 = vpop.permute.xlu0 %1122
    %1124 = vrot.lane.b32.xlu0 %v1037, 64
    %v1125 = vpop.permute.xlu0 %1124
    %1128 = vmatpush.msra.mxu0 0.0
    %1129 = vmatpush.msra.mxu0 0.0
    %1130 = vmatpush.msra.mxu0 0.0
    %1131 = vmatpush.msra.mxu0 0.0
    %1132 = vmatpush.msra.mxu0 0.0
    %1133 = vmatpush.msra.mxu0 0.0
    %1134 = vmatpush.msra.mxu0 0.0
    %1135 = vmatpush.msra.mxu0 0.0
    %1136 = vmatpush.msra.mxu0 0.0
    %1137 = vmatpush.msra.mxu0 0.0
    %1138 = vmatpush.msra.mxu0 0.0
    %1139 = vmatpush.msra.mxu0 0.0
    %1140 = vmatpush.msra.mxu0 0.0
    %1141 = vmatpush.msra.mxu0 0.0
    %1142 = vmatpush.msra.mxu0 %v1125
    %1143 = vmatpush.msra.mxu0 %v1123
    %1144 = vmatmul.f32.gmra.mxu0 %v372
    %v1145 = vpop.f32.mrf.mxu0
    %v1146 = vadd.f32 %v1057, %v1145
    %1147 = vmatmul.f32.gmra.mxu0 %v375
    %v1148 = vpop.f32.mrf.mxu0
    %v1149 = vadd.f32 %v1060, %v1148
    %1150 = vmatmul.f32.gmra.mxu0 %v378
    %v1151 = vpop.f32.mrf.mxu0
    %v1152 = vadd.f32 %v1063, %v1151
    %1153 = vmatmul.f32.gmra.mxu0 %v381
    %v1154 = vpop.f32.mrf.mxu0
    %v1155 = vadd.f32 %v1066, %v1154
    %1156 = vmatmul.f32.gmra.mxu0 %v384
    %v1157 = vpop.f32.mrf.mxu0
    %v1158 = vadd.f32 %v1069, %v1157
    %1159 = vdwg.mxu0
    %v1160 = vadd.f32 %v1146, %v1106
    %v1161 = vadd.f32 %v1149, %v1109
    %v1162 = vadd.f32 %v1152, %v1112
    %v1163 = vadd.f32 %v1155, %v1115
    %v1164 = vadd.f32 %v1158, %v1118
    %vm1165 = vcmp.gt.f32.partialorder %v1160, 0.0
    %vm1166 = vcmp.gt.f32.partialorder %v1161, 0.0
    %vm1167 = vcmp.gt.f32.partialorder %v1162, 0.0
    %vm1168 = vcmp.gt.f32.partialorder %v1163, 0.0
    %vm1169 = vcmp.gt.f32.partialorder %v1164, 0.0
    %v1170 = vmul.f32 %v1160, 0.2
    %v1171 = vmul.f32 %v1161, 0.2
    %v1172 = vmul.f32 %v1162, 0.2
    %v1173 = vmul.f32 %v1163, 0.2
    %v1174 = vmul.f32 %v1164, 0.2
    %v1175 = vsel %vm1165, %v1160, %v1170
    %v1176 = vsel %vm1166, %v1161, %v1171
    %v1177 = vsel %vm1167, %v1162, %v1172
    %v1178 = vsel %vm1168, %v1163, %v1173
    %v1179 = vsel %vm1169, %v1164, %v1174
    %v1180 = vld [vmem:[%s18] sm:$0xff]
    %v1181 = vld [vmem:[%s18 + $0x8] sm:$0xff]
    %v1182 = vld [vmem:[%s18 + $0x10] sm:$0xff]
    %v1183 = vld [vmem:[%s18 + $0x18] sm:$0xff]
    %v1184 = vld [vmem:[%s18 + $0x20] sm:$0xff]
    %v1185 = vld [vmem:[%s18 + $0x28] sm:$0xff]
    %v1186 = vld [vmem:[%s18 + $0x30] sm:$0xff]
    %v1187 = vld [vmem:[%s18 + $0x38] sm:$0xff]
    %v1189 = vsel %vm446, %v1175, 0
    %v1192 = vsel %vm446, %v1176, 0
    %v1195 = vsel %vm446, %v1177, 0
    %v1198 = vsel %vm446, %v1178, 0
    %v1201 = vsel %vm446, %v1179, 0
    %1203 = vmatpush.msra.mxu0 0.0
    %1204 = vmatpush.msra.mxu0 0.0
    %1205 = vmatpush.msra.mxu0 0.0
    %1206 = vmatpush.msra.mxu0 0.0
    %1207 = vmatpush.msra.mxu0 0.0
    %1208 = vmatpush.msra.mxu0 0.0
    %1209 = vmatpush.msra.mxu0 0.0
    %1210 = vmatpush.msra.mxu0 0.0
    %1211 = vmatpush.msra.mxu0 %v1187
    %1212 = vmatpush.msra.mxu0 %v1186
    %1213 = vmatpush.msra.mxu0 %v1185
    %1214 = vmatpush.msra.mxu0 %v1184
    %1215 = vmatpush.msra.mxu0 %v1183
    %1216 = vmatpush.msra.mxu0 %v1182
    %1217 = vmatpush.msra.mxu0 %v1181
    %1218 = vmatpush.msra.mxu0 %v1180
    %1219 = vmatmul.f32.gmra.mxu0 %v1189
    %v1220 = vpop.f32.mrf.mxu0
    %v1221 = vadd.f32 0.0, %v1220
    %1222 = vmatmul.f32.gmra.mxu0 %v1192
    %v1223 = vpop.f32.mrf.mxu0
    %v1224 = vadd.f32 0.0, %v1223
    %1225 = vmatmul.f32.gmra.mxu0 %v1195
    %v1226 = vpop.f32.mrf.mxu0
    %v1227 = vadd.f32 0.0, %v1226
    %1228 = vmatmul.f32.gmra.mxu0 %v1198
    %v1229 = vpop.f32.mrf.mxu0
    %v1230 = vadd.f32 0.0, %v1229
    %1231 = vmatmul.f32.gmra.mxu0 %v1201
    %v1232 = vpop.f32.mrf.mxu0
    %v1233 = vadd.f32 0.0, %v1232
    %1234 = vdwg.mxu0
    %1236 = vset.pattern.permute.xlu0 0
    %1237 = vperm.xlu0 %1236, %v1221
    %v1238 = vpop.permute.xlu0 %1237
    %1241 = vset.pattern.permute.xlu0 0
    %1242 = vperm.xlu0 %1241, %v1224
    %v1243 = vpop.permute.xlu0 %1242
    %1246 = vset.pattern.permute.xlu0 0
    %1247 = vperm.xlu0 %1246, %v1227
    %v1248 = vpop.permute.xlu0 %1247
    %1251 = vset.pattern.permute.xlu0 0
    %1252 = vperm.xlu0 %1251, %v1230
    %v1253 = vpop.permute.xlu0 %1252
    %1256 = vset.pattern.permute.xlu0 0
    %1257 = vperm.xlu0 %1256, %v1233
    %v1258 = vpop.permute.xlu0 %1257
    %v1260 = vsel %vm494, %v1238, -1e+30
    %v1261 = vsel %vm495, %v1243, -1e+30
    %v1262 = vsel %vm496, %v1248, -1e+30
    %v1263 = vsel %vm497, %v1253, -1e+30
    %v1264 = vsel %vm498, %v1258, -1e+30
    %v1265 = vsel %vm266, %v1260, -inf
    %v1266 = vsel %vm266, %v1261, -inf
    %v1267 = vsel %vm266, %v1262, -inf
    %v1268 = vsel %vm266, %v1263, -inf
    %v1269 = vsel %vm266, %v1264, -inf
    %v1270 = vmax.f32 %v1265, %v1269
    %v1271 = vmax.f32 %v1270, %v1266
    %v1272 = vmax.f32 %v1267, %v1268
    %v1273 = vmax.f32 %v1271, %v1272
    %v1274 = vrot.slane %v1273, 4
    %v1275 = vmax.f32 %v1273, %v1274
    %v1276 = vrot.slane %v1275, 2
    %v1277 = vmax.f32 %v1275, %v1276
    %v1278 = vrot.slane %v1277, 1
    %v1279 = vmax.f32 %v1277, %v1278
    %v1280 = vmul.f32 %v151, %v1279
    %v1281 = vmul.f32 %v152, %v1279
    %v1282 = vmul.f32 %v153, %v1279
    %v1283 = vmul.f32 %v154, %v1279
    %v1284 = vmul.f32 %v155, %v1279
    %v1285 = vsel %vm266, %v1280, 0.0
    %1286 = vadd.xlane.f32.xlu0 %v1285
    %v1287 = vpop.xlane.xlu0 %1286
    %v1288 = vsel %vm266, %v1281, 0.0
    %1289 = vadd.xlane.f32.xlu0 %v1288
    %v1290 = vpop.xlane.xlu0 %1289
    %v1291 = vsel %vm266, %v1282, 0.0
    %1292 = vadd.xlane.f32.xlu0 %v1291
    %v1293 = vpop.xlane.xlu0 %1292
    %v1294 = vsel %vm266, %v1283, 0.0
    %1295 = vadd.xlane.f32.xlu0 %v1294
    %v1296 = vpop.xlane.xlu0 %1295
    %v1297 = vsel %vm266, %v1284, 0.0
    %1298 = vadd.xlane.f32.xlu0 %v1297
    %v1299 = vpop.xlane.xlu0 %1298
    %v1300 = vsub.f32 %v1221, %v1287
    %v1301 = vsub.f32 %v1224, %v1290
    %v1302 = vsub.f32 %v1227, %v1293
    %v1303 = vsub.f32 %v1230, %v1296
    %v1304 = vsub.f32 %v1233, %v1299
    %v1305 = vmul.f32 %v1300, 1.442695
    %v1306 = vpow.pop %v1305
    %v1307 = vmul.f32 %v1301, 1.442695
    %v1308 = vpow.pop %v1307
    %v1309 = vmul.f32 %v1302, 1.442695
    %v1310 = vpow.pop %v1309
    %v1311 = vmul.f32 %v1303, 1.442695
    %v1312 = vpow.pop %v1311
    %v1313 = vmul.f32 %v1304, 1.442695
    %v1314 = vpow.pop %v1313
    %v1315 = vmul.f32 %v1306, %v160
    %v1316 = vmul.f32 %v1308, %v161
    %v1317 = vmul.f32 %v1310, %v162
    %v1318 = vmul.f32 %v1312, %v163
    %v1319 = vmul.f32 %v1314, %v164
    %1320 = vmatpush.msra.mxu0 0.0
    %1321 = vmatpush.msra.mxu0 0.0
    %1322 = vmatpush.msra.mxu0 0.0
    %1323 = vmatpush.msra.mxu0 0.0
    %1324 = vmatpush.msra.mxu0 0.0
    %1325 = vmatpush.msra.mxu0 0.0
    %1326 = vmatpush.msra.mxu0 0.0
    %1327 = vmatpush.msra.mxu0 0.0
    %1328 = vmatpush.msra.mxu0 0.0
    %1329 = vmatpush.msra.mxu0 0.0
    %1330 = vmatpush.msra.mxu0 0.0
    %1331 = vmatpush.msra.mxu0 %v1319
    %1332 = vmatpush.msra.mxu0 %v1318
    %1333 = vmatpush.msra.mxu0 %v1317
    %1334 = vmatpush.msra.mxu0 %v1316
    %1335 = vmatpush.msra.mxu0 %v1315
    %1336 = vmatmul.f32.gmra.mxu0 %v586
    %v1337 = vpop.f32.mrf.mxu0
    %v1338 = vadd.f32 0.0, %v1337
    %1339 = vmatmul.f32.gmra.mxu0 %v589
    %v1340 = vpop.f32.mrf.mxu0
    %v1341 = vadd.f32 0.0, %v1340
    %1342 = vdwg.mxu0
    %1343 = vmatpush.msra.mxu0 0.0
    %1344 = vmatpush.msra.mxu0 0.0
    %1345 = vmatpush.msra.mxu0 0.0
    %1346 = vmatpush.msra.mxu0 0.0
    %1347 = vmatpush.msra.mxu0 0.0
    %1348 = vmatpush.msra.mxu0 0.0
    %1349 = vmatpush.msra.mxu0 0.0
    %1350 = vmatpush.msra.mxu0 0.0
    %1351 = vmatpush.msra.mxu0 0.0
    %1352 = vmatpush.msra.mxu0 0.0
    %1353 = vmatpush.msra.mxu0 0.0
    %1354 = vmatpush.msra.mxu0 0.0
    %1355 = vmatpush.msra.mxu0 0.0
    %1356 = vmatpush.msra.mxu0 0.0
    %1357 = vmatpush.msra.mxu0 %v1341
    %1358 = vmatpush.msra.mxu0 %v1338
    %1359 = vmatmul.f32.gmra.mxu0 %v372
    %v1360 = vpop.f32.mrf.mxu0
    %v1361 = vadd.f32 %v614, %v1360
    %1362 = vmatmul.f32.gmra.mxu0 %v375
    %v1363 = vpop.f32.mrf.mxu0
    %v1364 = vadd.f32 %v615, %v1363
    %1365 = vmatmul.f32.gmra.mxu0 %v378
    %v1366 = vpop.f32.mrf.mxu0
    %v1367 = vadd.f32 %v616, %v1366
    %1368 = vmatmul.f32.gmra.mxu0 %v381
    %v1369 = vpop.f32.mrf.mxu0
    %v1370 = vadd.f32 %v617, %v1369
    %1371 = vmatmul.f32.gmra.mxu0 %v384
    %v1372 = vpop.f32.mrf.mxu0
    %v1373 = vadd.f32 %v618, %v1372
    %1374 = vdwg.mxu0
    %v1375 = vrcp.pop %v1361
    %v1376 = vrcp.pop %v1364
    %v1377 = vrcp.pop %v1367
    %v1378 = vrcp.pop %v1370
    %v1379 = vrcp.pop %v1373
    %v1380 = vmul.f32 %v1315, %v1375
    %v1381 = vmul.f32 %v1316, %v1376
    %v1382 = vmul.f32 %v1317, %v1377
    %v1383 = vmul.f32 %v1318, %v1378
    %v1384 = vmul.f32 %v1319, %v1379
    %1386 = vset.pattern.permute.xlu0 0
    %1387 = vperm.xlu0 %1386, %v1380
    %v1388 = vpop.permute.xlu0 %1387
    %1391 = vset.pattern.permute.xlu0 0
    %1392 = vperm.xlu0 %1391, %v1381
    %v1393 = vpop.permute.xlu0 %1392
    %1396 = vset.pattern.permute.xlu0 0
    %1397 = vperm.xlu0 %1396, %v1382
    %v1398 = vpop.permute.xlu0 %1397
    %1401 = vset.pattern.permute.xlu0 0
    %1402 = vperm.xlu0 %1401, %v1383
    %v1403 = vpop.permute.xlu0 %1402
    %1406 = vset.pattern.permute.xlu0 0
    %1407 = vperm.xlu0 %1406, %v1384
    %v1408 = vpop.permute.xlu0 %1407
    %v1410 = vmul.f32 %v1388, %v1057
    %v1411 = vmul.f32 %v1393, %v1060
    %v1412 = vmul.f32 %v1398, %v1063
    %v1413 = vmul.f32 %v1403, %v1066
    %v1414 = vmul.f32 %v1408, %v1069
    %1415 = vset.pattern.permute.xlu0 1
    %1416 = vperm.xlu0 %1415, %v1221
    %v1417 = vpop.permute.xlu0 %1416
    %1419 = vset.pattern.permute.xlu0 1
    %1420 = vperm.xlu0 %1419, %v1224
    %v1421 = vpop.permute.xlu0 %1420
    %1423 = vset.pattern.permute.xlu0 1
    %1424 = vperm.xlu0 %1423, %v1227
    %v1425 = vpop.permute.xlu0 %1424
    %1427 = vset.pattern.permute.xlu0 1
    %1428 = vperm.xlu0 %1427, %v1230
    %v1429 = vpop.permute.xlu0 %1428
    %1431 = vset.pattern.permute.xlu0 1
    %1432 = vperm.xlu0 %1431, %v1233
    %v1433 = vpop.permute.xlu0 %1432
    %v1435 = vsel %vm494, %v1417, -1e+30
    %v1436 = vsel %vm495, %v1421, -1e+30
    %v1437 = vsel %vm496, %v1425, -1e+30
    %v1438 = vsel %vm497, %v1429, -1e+30
    %v1439 = vsel %vm498, %v1433, -1e+30
    %v1440 = vsel %vm266, %v1435, -inf
    %v1441 = vsel %vm266, %v1436, -inf
    %v1442 = vsel %vm266, %v1437, -inf
    %v1443 = vsel %vm266, %v1438, -inf
    %v1444 = vsel %vm266, %v1439, -inf
    %v1445 = vmax.f32 %v1440, %v1444
    %v1446 = vmax.f32 %v1445, %v1441
    %v1447 = vmax.f32 %v1442, %v1443
    %v1448 = vmax.f32 %v1446, %v1447
    %v1449 = vrot.slane %v1448, 4
    %v1450 = vmax.f32 %v1448, %v1449
    %v1451 = vrot.slane %v1450, 2
    %v1452 = vmax.f32 %v1450, %v1451
    %v1453 = vrot.slane %v1452, 1
    %v1454 = vmax.f32 %v1452, %v1453
    %v1455 = vmul.f32 %v151, %v1454
    %v1456 = vmul.f32 %v152, %v1454
    %v1457 = vmul.f32 %v153, %v1454
    %v1458 = vmul.f32 %v154, %v1454
    %v1459 = vmul.f32 %v155, %v1454
    %v1460 = vsel %vm266, %v1455, 0.0
    %1461 = vadd.xlane.f32.xlu0 %v1460
    %v1462 = vpop.xlane.xlu0 %1461
    %v1463 = vsel %vm266, %v1456, 0.0
    %1464 = vadd.xlane.f32.xlu0 %v1463
    %v1465 = vpop.xlane.xlu0 %1464
    %v1466 = vsel %vm266, %v1457, 0.0
    %1467 = vadd.xlane.f32.xlu0 %v1466
    %v1468 = vpop.xlane.xlu0 %1467
    %v1469 = vsel %vm266, %v1458, 0.0
    %1470 = vadd.xlane.f32.xlu0 %v1469
    %v1471 = vpop.xlane.xlu0 %1470
    %v1472 = vsel %vm266, %v1459, 0.0
    %1473 = vadd.xlane.f32.xlu0 %v1472
    %v1474 = vpop.xlane.xlu0 %1473
    %v1475 = vsub.f32 %v1221, %v1462
    %v1476 = vsub.f32 %v1224, %v1465
    %v1477 = vsub.f32 %v1227, %v1468
    %v1478 = vsub.f32 %v1230, %v1471
    %v1479 = vsub.f32 %v1233, %v1474
    %v1480 = vmul.f32 %v1475, 1.442695
    %v1481 = vpow.pop %v1480
    %v1482 = vmul.f32 %v1476, 1.442695
    %v1483 = vpow.pop %v1482
    %v1484 = vmul.f32 %v1477, 1.442695
    %v1485 = vpow.pop %v1484
    %v1486 = vmul.f32 %v1478, 1.442695
    %v1487 = vpow.pop %v1486
    %v1488 = vmul.f32 %v1479, 1.442695
    %v1489 = vpow.pop %v1488
    %v1490 = vmul.f32 %v1481, %v772
    %v1491 = vmul.f32 %v1483, %v774
    %v1492 = vmul.f32 %v1485, %v776
    %v1493 = vmul.f32 %v1487, %v778
    %v1494 = vmul.f32 %v1489, %v780
    %1500 = vrot.lane.b32.xlu0 %v1490, 127
    %v1501 = vpop.permute.xlu0 %1500
    %1502 = vrot.lane.b32.xlu0 %v1491, 127
    %v1503 = vpop.permute.xlu0 %1502
    %1504 = vrot.lane.b32.xlu0 %v1492, 127
    %v1505 = vpop.permute.xlu0 %1504
    %1506 = vrot.lane.b32.xlu0 %v1493, 127
    %v1507 = vpop.permute.xlu0 %1506
    %1508 = vrot.lane.b32.xlu0 %v1494, 127
    %v1509 = vpop.permute.xlu0 %1508
    %1515 = vmatpush.msra.mxu0 0.0
    %1516 = vmatpush.msra.mxu0 0.0
    %1517 = vmatpush.msra.mxu0 0.0
    %1518 = vmatpush.msra.mxu0 0.0
    %1519 = vmatpush.msra.mxu0 0.0
    %1520 = vmatpush.msra.mxu0 0.0
    %1521 = vmatpush.msra.mxu0 0.0
    %1522 = vmatpush.msra.mxu0 0.0
    %1523 = vmatpush.msra.mxu0 0.0
    %1524 = vmatpush.msra.mxu0 0.0
    %1525 = vmatpush.msra.mxu0 0.0
    %1526 = vmatpush.msra.mxu0 %v1509
    %1527 = vmatpush.msra.mxu0 %v1507
    %1528 = vmatpush.msra.mxu0 %v1505
    %1529 = vmatpush.msra.mxu0 %v1503
    %1530 = vmatpush.msra.mxu0 %v1501
    %1531 = vmatmul.f32.gmra.mxu0 %v586
    %v1532 = vpop.f32.mrf.mxu0
    %v1533 = vadd.f32 0.0, %v1532
    %1534 = vmatmul.f32.gmra.mxu0 %v589
    %v1535 = vpop.f32.mrf.mxu0
    %v1536 = vadd.f32 0.0, %v1535
    %1537 = vdwg.mxu0
    %1538 = vmatpush.msra.mxu0 0.0
    %1539 = vmatpush.msra.mxu0 0.0
    %1540 = vmatpush.msra.mxu0 0.0
    %1541 = vmatpush.msra.mxu0 0.0
    %1542 = vmatpush.msra.mxu0 0.0
    %1543 = vmatpush.msra.mxu0 0.0
    %1544 = vmatpush.msra.mxu0 0.0
    %1545 = vmatpush.msra.mxu0 0.0
    %1546 = vmatpush.msra.mxu0 0.0
    %1547 = vmatpush.msra.mxu0 0.0
    %1548 = vmatpush.msra.mxu0 0.0
    %1549 = vmatpush.msra.mxu0 0.0
    %1550 = vmatpush.msra.mxu0 0.0
    %1551 = vmatpush.msra.mxu0 0.0
    %1552 = vmatpush.msra.mxu0 %v1536
    %1553 = vmatpush.msra.mxu0 %v1533
    %1554 = vmatmul.f32.gmra.mxu0 %v372
    %v1555 = vpop.f32.mrf.mxu0
    %v1556 = vadd.f32 %v614, %v1555
    %1557 = vmatmul.f32.gmra.mxu0 %v375
    %v1558 = vpop.f32.mrf.mxu0
    %v1559 = vadd.f32 %v615, %v1558
    %1560 = vmatmul.f32.gmra.mxu0 %v378
    %v1561 = vpop.f32.mrf.mxu0
    %v1562 = vadd.f32 %v616, %v1561
    %1563 = vmatmul.f32.gmra.mxu0 %v381
    %v1564 = vpop.f32.mrf.mxu0
    %v1565 = vadd.f32 %v617, %v1564
    %1566 = vmatmul.f32.gmra.mxu0 %v384
    %v1567 = vpop.f32.mrf.mxu0
    %v1568 = vadd.f32 %v618, %v1567
    %1569 = vdwg.mxu0
    %v1570 = vrcp.pop %v1556
    %v1571 = vrcp.pop %v1559
    %v1572 = vrcp.pop %v1562
    %v1573 = vrcp.pop %v1565
    %v1574 = vrcp.pop %v1568
    %1580 = vrot.lane.b32.xlu0 %v1570, 1
    %v1581 = vpop.permute.xlu0 %1580
    %1582 = vrot.lane.b32.xlu0 %v1571, 1
    %v1583 = vpop.permute.xlu0 %1582
    %1584 = vrot.lane.b32.xlu0 %v1572, 1
    %v1585 = vpop.permute.xlu0 %1584
    %1586 = vrot.lane.b32.xlu0 %v1573, 1
    %v1587 = vpop.permute.xlu0 %1586
    %1588 = vrot.lane.b32.xlu0 %v1574, 1
    %v1589 = vpop.permute.xlu0 %1588
    %v1595 = vmul.f32 %v1490, %v1581
    %v1596 = vmul.f32 %v1491, %v1583
    %v1597 = vmul.f32 %v1492, %v1585
    %v1598 = vmul.f32 %v1493, %v1587
    %v1599 = vmul.f32 %v1494, %v1589
    %1601 = vset.pattern.permute.xlu0 1
    %1602 = vperm.xlu0 %1601, %v1595
    %v1603 = vpop.permute.xlu0 %1602
    %1606 = vset.pattern.permute.xlu0 1
    %1607 = vperm.xlu0 %1606, %v1596
    %v1608 = vpop.permute.xlu0 %1607
    %1611 = vset.pattern.permute.xlu0 1
    %1612 = vperm.xlu0 %1611, %v1597
    %v1613 = vpop.permute.xlu0 %1612
    %1616 = vset.pattern.permute.xlu0 1
    %1617 = vperm.xlu0 %1616, %v1598
    %v1618 = vpop.permute.xlu0 %1617
    %1621 = vset.pattern.permute.xlu0 1
    %1622 = vperm.xlu0 %1621, %v1599
    %v1623 = vpop.permute.xlu0 %1622
    %v1625 = vmul.f32 %v1603, %v1057
    %v1626 = vmul.f32 %v1608, %v1060
    %v1627 = vmul.f32 %v1613, %v1063
    %v1628 = vmul.f32 %v1618, %v1066
    %v1629 = vmul.f32 %v1623, %v1069
    %1635 = vrot.lane.b32.xlu0 %v1625, 96
    %v1636 = vpop.permute.xlu0 %1635
    %1637 = vrot.lane.b32.xlu0 %v1626, 96
    %v1638 = vpop.permute.xlu0 %1637
    %1639 = vrot.lane.b32.xlu0 %v1627, 96
    %v1640 = vpop.permute.xlu0 %1639
    %1641 = vrot.lane.b32.xlu0 %v1628, 96
    %v1642 = vpop.permute.xlu0 %1641
    %1643 = vrot.lane.b32.xlu0 %v1629, 96
    %v1644 = vpop.permute.xlu0 %1643
    %1650 = vmatpush.msra.mxu0 0.0
    %1651 = vmatpush.msra.mxu0 0.0
    %1652 = vmatpush.msra.mxu0 0.0
    %1653 = vmatpush.msra.mxu0 0.0
    %1654 = vmatpush.msra.mxu0 0.0
    %1655 = vmatpush.msra.mxu0 0.0
    %1656 = vmatpush.msra.mxu0 0.0
    %1657 = vmatpush.msra.mxu0 0.0
    %1658 = vmatpush.msra.mxu0 0.0
    %1659 = vmatpush.msra.mxu0 0.0
    %1660 = vmatpush.msra.mxu0 0.0
    %1661 = vmatpush.msra.mxu0 %v1644
    %1662 = vmatpush.msra.mxu0 %v1642
    %1663 = vmatpush.msra.mxu0 %v1640
    %1664 = vmatpush.msra.mxu0 %v1638
    %1665 = vmatpush.msra.mxu0 %v1636
    %1666 = vmatmul.f32.gmra.mxu0 %v586
    %v1667 = vpop.f32.mrf.mxu0
    %v1668 = vadd.f32 0.0, %v1667
    %1669 = vmatmul.f32.gmra.mxu0 %v589
    %v1670 = vpop.f32.mrf.mxu0
    %v1671 = vadd.f32 0.0, %v1670
    %1672 = vdwg.mxu0
    %1673 = vmatpush.msra.mxu0 0.0
    %1674 = vmatpush.msra.mxu0 0.0
    %1675 = vmatpush.msra.mxu0 0.0
    %1676 = vmatpush.msra.mxu0 0.0
    %1677 = vmatpush.msra.mxu0 0.0
    %1678 = vmatpush.msra.mxu0 0.0
    %1679 = vmatpush.msra.mxu0 0.0
    %1680 = vmatpush.msra.mxu0 0.0
    %1681 = vmatpush.msra.mxu0 0.0
    %1682 = vmatpush.msra.mxu0 0.0
    %1683 = vmatpush.msra.mxu0 0.0
    %1684 = vmatpush.msra.mxu0 %v1414
    %1685 = vmatpush.msra.mxu0 %v1413
    %1686 = vmatpush.msra.mxu0 %v1412
    %1687 = vmatpush.msra.mxu0 %v1411
    %1688 = vmatpush.msra.mxu0 %v1410
    %1689 = vmatmul.f32.gmra.mxu0 %v586
    %v1690 = vpop.f32.mrf.mxu0
    %v1691 = vadd.f32 %v1668, %v1690
    %1692 = vmatmul.f32.gmra.mxu0 %v589
    %v1693 = vpop.f32.mrf.mxu0
    %v1694 = vadd.f32 %v1671, %v1693
    %1695 = vdwg.mxu0
    %v1696 = vmul.f32 %v1691, 0.5
    %v1697 = vmul.f32 %v1694, 0.5
    %v1698 = vld [vmem:[%s19] sm:$0x1]
    %v1700 = vperm.slane %v1698, 0
    %v1702 = vadd.f32 %v1696, %v1700
    %v1703 = vadd.f32 %v1697, %v1700
    %v1704 = vmax.f32 %v1702, 0.0
    %v1705 = vmax.f32 %v1703, 0.0
    %v1706 = vld [vmem:[%s20] sm:$0xff]
    %v1707 = vld [vmem:[%s20 + $0x8] sm:$0xff]
    %v1708 = vld [vmem:[%s20 + $0x10] sm:$0xff]
    %v1709 = vld [vmem:[%s20 + $0x18] sm:$0xff]
    %v1710 = vld [vmem:[%s21] sm:$0x1]
    %v1712 = vperm.slane %v1710, 0
    %v1715 = vsel %vm236, %v1704, 0
    %v1718 = vsel %vm236, %v1705, 0
    %1720 = vmatpush.msra.mxu0 0.0
    %1721 = vmatpush.msra.mxu0 0.0
    %1722 = vmatpush.msra.mxu0 0.0
    %1723 = vmatpush.msra.mxu0 0.0
    %1724 = vmatpush.msra.mxu0 0.0
    %1725 = vmatpush.msra.mxu0 0.0
    %1726 = vmatpush.msra.mxu0 0.0
    %1727 = vmatpush.msra.mxu0 0.0
    %1728 = vmatpush.msra.mxu0 0.0
    %1729 = vmatpush.msra.mxu0 0.0
    %1730 = vmatpush.msra.mxu0 0.0
    %1731 = vmatpush.msra.mxu0 0.0
    %1732 = vmatpush.msra.mxu0 %v1709
    %1733 = vmatpush.msra.mxu0 %v1708
    %1734 = vmatpush.msra.mxu0 %v1707
    %1735 = vmatpush.msra.mxu0 %v1706
    %1736 = vmatmul.f32.gmra.mxu0 %v1715
    %v1737 = vpop.f32.mrf.mxu0
    %v1738 = vadd.f32 %v1712, %v1737
    %1739 = vmatmul.f32.gmra.mxu0 %v1718
    %v1740 = vpop.f32.mrf.mxu0
    %v1741 = vadd.f32 %v1712, %v1740
    %1742 = vdwg.mxu0
    %1743 = vmatpush.msra.mxu0 0.0
    %1744 = vmatpush.msra.mxu0 0.0
    %1745 = vmatpush.msra.mxu0 0.0
    %1746 = vmatpush.msra.mxu0 0.0
    %1747 = vmatpush.msra.mxu0 0.0
    %1748 = vmatpush.msra.mxu0 0.0
    %1749 = vmatpush.msra.mxu0 0.0
    %1750 = vmatpush.msra.mxu0 0.0
    %1751 = vmatpush.msra.mxu0 0.0
    %1752 = vmatpush.msra.mxu0 0.0
    %1753 = vmatpush.msra.mxu0 0.0
    %1754 = vmatpush.msra.mxu0 0.0
    %1755 = vmatpush.msra.mxu0 0.0
    %1756 = vmatpush.msra.mxu0 0.0
    %1757 = vmatpush.msra.mxu0 %v1741
    %1758 = vmatpush.msra.mxu0 %v1738
    %1759 = vmatmul.f32.gmra.mxu0 %v268
    %v1760 = vpop.f32.mrf.mxu0
    %v1761 = vadd.f32 0.0, %v1760
    %1762 = vmatmul.f32.gmra.mxu0 %v271
    %v1763 = vpop.f32.mrf.mxu0
    %v1764 = vadd.f32 0.0, %v1763
    %1765 = vmatmul.f32.gmra.mxu0 %v274
    %v1766 = vpop.f32.mrf.mxu0
    %v1767 = vadd.f32 0.0, %v1766
    %1768 = vmatmul.f32.gmra.mxu0 %v277
    %v1769 = vpop.f32.mrf.mxu0
    %v1770 = vadd.f32 0.0, %v1769
    %1771 = vmatmul.f32.gmra.mxu0 %v280
    %v1772 = vpop.f32.mrf.mxu0
    %v1773 = vadd.f32 0.0, %v1772
    %1774 = vdwg.mxu0
    %v1775 = vld [vmem:[%s22] sm:$0xff]
    %v1776 = vld [vmem:[%s22 + $0x8] sm:$0xff]
    %1777 = vmatpush.msra.mxu0 0.0
    %1778 = vmatpush.msra.mxu0 0.0
    %1779 = vmatpush.msra.mxu0 0.0
    %1780 = vmatpush.msra.mxu0 0.0
    %1781 = vmatpush.msra.mxu0 0.0
    %1782 = vmatpush.msra.mxu0 0.0
    %1783 = vmatpush.msra.mxu0 0.0
    %1784 = vmatpush.msra.mxu0 0.0
    %1785 = vmatpush.msra.mxu0 0.0
    %1786 = vmatpush.msra.mxu0 0.0
    %1787 = vmatpush.msra.mxu0 0.0
    %1788 = vmatpush.msra.mxu0 0.0
    %1789 = vmatpush.msra.mxu0 0.0
    %1790 = vmatpush.msra.mxu0 0.0
    %1791 = vmatpush.msra.mxu0 %v1776
    %1792 = vmatpush.msra.mxu0 %v1775
    %1793 = vmatmul.f32.gmra.mxu0 %v1074
    %v1794 = vpop.f32.mrf.mxu0
    %v1795 = vadd.f32 0.0, %v1794
    %1796 = vmatmul.f32.gmra.mxu0 %v1077
    %v1797 = vpop.f32.mrf.mxu0
    %v1798 = vadd.f32 0.0, %v1797
    %1799 = vmatmul.f32.gmra.mxu0 %v1080
    %v1800 = vpop.f32.mrf.mxu0
    %v1801 = vadd.f32 0.0, %v1800
    %1802 = vmatmul.f32.gmra.mxu0 %v1083
    %v1803 = vpop.f32.mrf.mxu0
    %v1804 = vadd.f32 0.0, %v1803
    %1805 = vmatmul.f32.gmra.mxu0 %v1086
    %v1806 = vpop.f32.mrf.mxu0
    %v1807 = vadd.f32 0.0, %v1806
    %1808 = vdwg.mxu0
    %1811 = vrot.lane.b32.xlu0 %v1738, 64
    %v1812 = vpop.permute.xlu0 %1811
    %1813 = vrot.lane.b32.xlu0 %v1741, 64
    %v1814 = vpop.permute.xlu0 %1813
    %1817 = vmatpush.msra.mxu0 0.0
    %1818 = vmatpush.msra.mxu0 0.0
    %1819 = vmatpush.msra.mxu0 0.0
    %1820 = vmatpush.msra.mxu0 0.0
    %1821 = vmatpush.msra.mxu0 0.0
    %1822 = vmatpush.msra.mxu0 0.0
    %1823 = vmatpush.msra.mxu0 0.0
    %1824 = vmatpush.msra.mxu0 0.0
    %1825 = vmatpush.msra.mxu0 0.0
    %1826 = vmatpush.msra.mxu0 0.0
    %1827 = vmatpush.msra.mxu0 0.0
    %1828 = vmatpush.msra.mxu0 0.0
    %1829 = vmatpush.msra.mxu0 0.0
    %1830 = vmatpush.msra.mxu0 0.0
    %1831 = vmatpush.msra.mxu0 %v1814
    %1832 = vmatpush.msra.mxu0 %v1812
    %1833 = vmatmul.f32.gmra.mxu0 %v372
    %v1834 = vpop.f32.mrf.mxu0
    %v1835 = vadd.f32 %v1761, %v1834
    %1836 = vmatmul.f32.gmra.mxu0 %v375
    %v1837 = vpop.f32.mrf.mxu0
    %v1838 = vadd.f32 %v1764, %v1837
    %1839 = vmatmul.f32.gmra.mxu0 %v378
    %v1840 = vpop.f32.mrf.mxu0
    %v1841 = vadd.f32 %v1767, %v1840
    %1842 = vmatmul.f32.gmra.mxu0 %v381
    %v1843 = vpop.f32.mrf.mxu0
    %v1844 = vadd.f32 %v1770, %v1843
    %1845 = vmatmul.f32.gmra.mxu0 %v384
    %v1846 = vpop.f32.mrf.mxu0
    %v1847 = vadd.f32 %v1773, %v1846
    %1848 = vdwg.mxu0
    %v1849 = vadd.f32 %v1835, %v1795
    %v1850 = vadd.f32 %v1838, %v1798
    %v1851 = vadd.f32 %v1841, %v1801
    %v1852 = vadd.f32 %v1844, %v1804
    %v1853 = vadd.f32 %v1847, %v1807
    %vm1854 = vcmp.gt.f32.partialorder %v1849, 0.0
    %vm1855 = vcmp.gt.f32.partialorder %v1850, 0.0
    %vm1856 = vcmp.gt.f32.partialorder %v1851, 0.0
    %vm1857 = vcmp.gt.f32.partialorder %v1852, 0.0
    %vm1858 = vcmp.gt.f32.partialorder %v1853, 0.0
    %v1859 = vmul.f32 %v1849, 0.2
    %v1860 = vmul.f32 %v1850, 0.2
    %v1861 = vmul.f32 %v1851, 0.2
    %v1862 = vmul.f32 %v1852, 0.2
    %v1863 = vmul.f32 %v1853, 0.2
    %v1864 = vsel %vm1854, %v1849, %v1859
    %v1865 = vsel %vm1855, %v1850, %v1860
    %v1866 = vsel %vm1856, %v1851, %v1861
    %v1867 = vsel %vm1857, %v1852, %v1862
    %v1868 = vsel %vm1858, %v1853, %v1863
    %v1869 = vld [vmem:[%s23] sm:$0xff]
    %v1870 = vld [vmem:[%s23 + $0x8] sm:$0xff]
    %v1871 = vld [vmem:[%s23 + $0x10] sm:$0xff]
    %v1872 = vld [vmem:[%s23 + $0x18] sm:$0xff]
    %v1873 = vld [vmem:[%s23 + $0x20] sm:$0xff]
    %v1874 = vld [vmem:[%s23 + $0x28] sm:$0xff]
    %v1875 = vld [vmem:[%s23 + $0x30] sm:$0xff]
    %v1876 = vld [vmem:[%s23 + $0x38] sm:$0xff]
    %v1878 = vsel %vm446, %v1864, 0
    %v1881 = vsel %vm446, %v1865, 0
    %v1884 = vsel %vm446, %v1866, 0
    %v1887 = vsel %vm446, %v1867, 0
    %v1890 = vsel %vm446, %v1868, 0
    %1892 = vmatpush.msra.mxu0 0.0
    %1893 = vmatpush.msra.mxu0 0.0
    %1894 = vmatpush.msra.mxu0 0.0
    %1895 = vmatpush.msra.mxu0 0.0
    %1896 = vmatpush.msra.mxu0 0.0
    %1897 = vmatpush.msra.mxu0 0.0
    %1898 = vmatpush.msra.mxu0 0.0
    %1899 = vmatpush.msra.mxu0 0.0
    %1900 = vmatpush.msra.mxu0 %v1876
    %1901 = vmatpush.msra.mxu0 %v1875
    %1902 = vmatpush.msra.mxu0 %v1874
    %1903 = vmatpush.msra.mxu0 %v1873
    %1904 = vmatpush.msra.mxu0 %v1872
    %1905 = vmatpush.msra.mxu0 %v1871
    %1906 = vmatpush.msra.mxu0 %v1870
    %1907 = vmatpush.msra.mxu0 %v1869
    %1908 = vmatmul.f32.gmra.mxu0 %v1878
    %v1909 = vpop.f32.mrf.mxu0
    %v1910 = vadd.f32 0.0, %v1909
    %1911 = vmatmul.f32.gmra.mxu0 %v1881
    %v1912 = vpop.f32.mrf.mxu0
    %v1913 = vadd.f32 0.0, %v1912
    %1914 = vmatmul.f32.gmra.mxu0 %v1884
    %v1915 = vpop.f32.mrf.mxu0
    %v1916 = vadd.f32 0.0, %v1915
    %1917 = vmatmul.f32.gmra.mxu0 %v1887
    %v1918 = vpop.f32.mrf.mxu0
    %v1919 = vadd.f32 0.0, %v1918
    %1920 = vmatmul.f32.gmra.mxu0 %v1890
    %v1921 = vpop.f32.mrf.mxu0
    %v1922 = vadd.f32 0.0, %v1921
    %1923 = vdwg.mxu0
    %1925 = vset.pattern.permute.xlu0 0
    %1926 = vperm.xlu0 %1925, %v1910
    %v1927 = vpop.permute.xlu0 %1926
    %1930 = vset.pattern.permute.xlu0 0
    %1931 = vperm.xlu0 %1930, %v1913
    %v1932 = vpop.permute.xlu0 %1931
    %1935 = vset.pattern.permute.xlu0 0
    %1936 = vperm.xlu0 %1935, %v1916
    %v1937 = vpop.permute.xlu0 %1936
    %1940 = vset.pattern.permute.xlu0 0
    %1941 = vperm.xlu0 %1940, %v1919
    %v1942 = vpop.permute.xlu0 %1941
    %1945 = vset.pattern.permute.xlu0 0
    %1946 = vperm.xlu0 %1945, %v1922
    %v1947 = vpop.permute.xlu0 %1946
    %v1949 = vsel %vm494, %v1927, -1e+30
    %v1950 = vsel %vm495, %v1932, -1e+30
    %v1951 = vsel %vm496, %v1937, -1e+30
    %v1952 = vsel %vm497, %v1942, -1e+30
    %v1953 = vsel %vm498, %v1947, -1e+30
    %v1954 = vsel %vm266, %v1949, -inf
    %v1955 = vsel %vm266, %v1950, -inf
    %v1956 = vsel %vm266, %v1951, -inf
    %v1957 = vsel %vm266, %v1952, -inf
    %v1958 = vsel %vm266, %v1953, -inf
    %v1959 = vmax.f32 %v1954, %v1958
    %v1960 = vmax.f32 %v1959, %v1955
    %v1961 = vmax.f32 %v1956, %v1957
    %v1962 = vmax.f32 %v1960, %v1961
    %v1963 = vrot.slane %v1962, 4
    %v1964 = vmax.f32 %v1962, %v1963
    %v1965 = vrot.slane %v1964, 2
    %v1966 = vmax.f32 %v1964, %v1965
    %v1967 = vrot.slane %v1966, 1
    %v1968 = vmax.f32 %v1966, %v1967
    %v1969 = vmul.f32 %v151, %v1968
    %v1970 = vmul.f32 %v152, %v1968
    %v1971 = vmul.f32 %v153, %v1968
    %v1972 = vmul.f32 %v154, %v1968
    %v1973 = vmul.f32 %v155, %v1968
    %v1974 = vsel %vm266, %v1969, 0.0
    %1975 = vadd.xlane.f32.xlu0 %v1974
    %v1976 = vpop.xlane.xlu0 %1975
    %v1977 = vsel %vm266, %v1970, 0.0
    %1978 = vadd.xlane.f32.xlu0 %v1977
    %v1979 = vpop.xlane.xlu0 %1978
    %v1980 = vsel %vm266, %v1971, 0.0
    %1981 = vadd.xlane.f32.xlu0 %v1980
    %v1982 = vpop.xlane.xlu0 %1981
    %v1983 = vsel %vm266, %v1972, 0.0
    %1984 = vadd.xlane.f32.xlu0 %v1983
    %v1985 = vpop.xlane.xlu0 %1984
    %v1986 = vsel %vm266, %v1973, 0.0
    %1987 = vadd.xlane.f32.xlu0 %v1986
    %v1988 = vpop.xlane.xlu0 %1987
    %v1989 = vsub.f32 %v1910, %v1976
    %v1990 = vsub.f32 %v1913, %v1979
    %v1991 = vsub.f32 %v1916, %v1982
    %v1992 = vsub.f32 %v1919, %v1985
    %v1993 = vsub.f32 %v1922, %v1988
    %v1994 = vmul.f32 %v1989, 1.442695
    %v1995 = vpow.pop %v1994
    %v1996 = vmul.f32 %v1990, 1.442695
    %v1997 = vpow.pop %v1996
    %v1998 = vmul.f32 %v1991, 1.442695
    %v1999 = vpow.pop %v1998
    %v2000 = vmul.f32 %v1992, 1.442695
    %v2001 = vpow.pop %v2000
    %v2002 = vmul.f32 %v1993, 1.442695
    %v2003 = vpow.pop %v2002
    %v2004 = vmul.f32 %v1995, %v160
    %v2005 = vmul.f32 %v1997, %v161
    %v2006 = vmul.f32 %v1999, %v162
    %v2007 = vmul.f32 %v2001, %v163
    %v2008 = vmul.f32 %v2003, %v164
    %2009 = vmatpush.msra.mxu0 0.0
    %2010 = vmatpush.msra.mxu0 0.0
    %2011 = vmatpush.msra.mxu0 0.0
    %2012 = vmatpush.msra.mxu0 0.0
    %2013 = vmatpush.msra.mxu0 0.0
    %2014 = vmatpush.msra.mxu0 0.0
    %2015 = vmatpush.msra.mxu0 0.0
    %2016 = vmatpush.msra.mxu0 0.0
    %2017 = vmatpush.msra.mxu0 0.0
    %2018 = vmatpush.msra.mxu0 0.0
    %2019 = vmatpush.msra.mxu0 0.0
    %2020 = vmatpush.msra.mxu0 %v2008
    %2021 = vmatpush.msra.mxu0 %v2007
    %2022 = vmatpush.msra.mxu0 %v2006
    %2023 = vmatpush.msra.mxu0 %v2005
    %2024 = vmatpush.msra.mxu0 %v2004
    %2025 = vmatmul.f32.gmra.mxu0 %v586
    %v2026 = vpop.f32.mrf.mxu0
    %v2027 = vadd.f32 0.0, %v2026
    %2028 = vmatmul.f32.gmra.mxu0 %v589
    %v2029 = vpop.f32.mrf.mxu0
    %v2030 = vadd.f32 0.0, %v2029
    %2031 = vdwg.mxu0
    %2032 = vmatpush.msra.mxu0 0.0
    %2033 = vmatpush.msra.mxu0 0.0
    %2034 = vmatpush.msra.mxu0 0.0
    %2035 = vmatpush.msra.mxu0 0.0
    %2036 = vmatpush.msra.mxu0 0.0
    %2037 = vmatpush.msra.mxu0 0.0
    %2038 = vmatpush.msra.mxu0 0.0
    %2039 = vmatpush.msra.mxu0 0.0
    %2040 = vmatpush.msra.mxu0 0.0
    %2041 = vmatpush.msra.mxu0 0.0
    %2042 = vmatpush.msra.mxu0 0.0
    %2043 = vmatpush.msra.mxu0 0.0
    %2044 = vmatpush.msra.mxu0 0.0
    %2045 = vmatpush.msra.mxu0 0.0
    %2046 = vmatpush.msra.mxu0 %v2030
    %2047 = vmatpush.msra.mxu0 %v2027
    %2048 = vmatmul.f32.gmra.mxu0 %v372
    %v2049 = vpop.f32.mrf.mxu0
    %v2050 = vadd.f32 %v614, %v2049
    %2051 = vmatmul.f32.gmra.mxu0 %v375
    %v2052 = vpop.f32.mrf.mxu0
    %v2053 = vadd.f32 %v615, %v2052
    %2054 = vmatmul.f32.gmra.mxu0 %v378
    %v2055 = vpop.f32.mrf.mxu0
    %v2056 = vadd.f32 %v616, %v2055
    %2057 = vmatmul.f32.gmra.mxu0 %v381
    %v2058 = vpop.f32.mrf.mxu0
    %v2059 = vadd.f32 %v617, %v2058
    %2060 = vmatmul.f32.gmra.mxu0 %v384
    %v2061 = vpop.f32.mrf.mxu0
    %v2062 = vadd.f32 %v618, %v2061
    %2063 = vdwg.mxu0
    %v2064 = vrcp.pop %v2050
    %v2065 = vrcp.pop %v2053
    %v2066 = vrcp.pop %v2056
    %v2067 = vrcp.pop %v2059
    %v2068 = vrcp.pop %v2062
    %v2069 = vmul.f32 %v2004, %v2064
    %v2070 = vmul.f32 %v2005, %v2065
    %v2071 = vmul.f32 %v2006, %v2066
    %v2072 = vmul.f32 %v2007, %v2067
    %v2073 = vmul.f32 %v2008, %v2068
    %2075 = vset.pattern.permute.xlu0 0
    %2076 = vperm.xlu0 %2075, %v2069
    %v2077 = vpop.permute.xlu0 %2076
    %2080 = vset.pattern.permute.xlu0 0
    %2081 = vperm.xlu0 %2080, %v2070
    %v2082 = vpop.permute.xlu0 %2081
    %2085 = vset.pattern.permute.xlu0 0
    %2086 = vperm.xlu0 %2085, %v2071
    %v2087 = vpop.permute.xlu0 %2086
    %2090 = vset.pattern.permute.xlu0 0
    %2091 = vperm.xlu0 %2090, %v2072
    %v2092 = vpop.permute.xlu0 %2091
    %2095 = vset.pattern.permute.xlu0 0
    %2096 = vperm.xlu0 %2095, %v2073
    %v2097 = vpop.permute.xlu0 %2096
    %v2099 = vmul.f32 %v2077, %v1761
    %v2100 = vmul.f32 %v2082, %v1764
    %v2101 = vmul.f32 %v2087, %v1767
    %v2102 = vmul.f32 %v2092, %v1770
    %v2103 = vmul.f32 %v2097, %v1773
    %2104 = vset.pattern.permute.xlu0 1
    %2105 = vperm.xlu0 %2104, %v1910
    %v2106 = vpop.permute.xlu0 %2105
    %2108 = vset.pattern.permute.xlu0 1
    %2109 = vperm.xlu0 %2108, %v1913
    %v2110 = vpop.permute.xlu0 %2109
    %2112 = vset.pattern.permute.xlu0 1
    %2113 = vperm.xlu0 %2112, %v1916
    %v2114 = vpop.permute.xlu0 %2113
    %2116 = vset.pattern.permute.xlu0 1
    %2117 = vperm.xlu0 %2116, %v1919
    %v2118 = vpop.permute.xlu0 %2117
    %2120 = vset.pattern.permute.xlu0 1
    %2121 = vperm.xlu0 %2120, %v1922
    %v2122 = vpop.permute.xlu0 %2121
    %v2124 = vsel %vm494, %v2106, -1e+30
    %v2125 = vsel %vm495, %v2110, -1e+30
    %v2126 = vsel %vm496, %v2114, -1e+30
    %v2127 = vsel %vm497, %v2118, -1e+30
    %v2128 = vsel %vm498, %v2122, -1e+30
    %v2129 = vsel %vm266, %v2124, -inf
    %v2130 = vsel %vm266, %v2125, -inf
    %v2131 = vsel %vm266, %v2126, -inf
    %v2132 = vsel %vm266, %v2127, -inf
    %v2133 = vsel %vm266, %v2128, -inf
    %v2134 = vmax.f32 %v2129, %v2133
    %v2135 = vmax.f32 %v2134, %v2130
    %v2136 = vmax.f32 %v2131, %v2132
    %v2137 = vmax.f32 %v2135, %v2136
    %v2138 = vrot.slane %v2137, 4
    %v2139 = vmax.f32 %v2137, %v2138
    %v2140 = vrot.slane %v2139, 2
    %v2141 = vmax.f32 %v2139, %v2140
    %v2142 = vrot.slane %v2141, 1
    %v2143 = vmax.f32 %v2141, %v2142
    %v2144 = vmul.f32 %v151, %v2143
    %v2145 = vmul.f32 %v152, %v2143
    %v2146 = vmul.f32 %v153, %v2143
    %v2147 = vmul.f32 %v154, %v2143
    %v2148 = vmul.f32 %v155, %v2143
    %v2149 = vsel %vm266, %v2144, 0.0
    %2150 = vadd.xlane.f32.xlu0 %v2149
    %v2151 = vpop.xlane.xlu0 %2150
    %v2152 = vsel %vm266, %v2145, 0.0
    %2153 = vadd.xlane.f32.xlu0 %v2152
    %v2154 = vpop.xlane.xlu0 %2153
    %v2155 = vsel %vm266, %v2146, 0.0
    %2156 = vadd.xlane.f32.xlu0 %v2155
    %v2157 = vpop.xlane.xlu0 %2156
    %v2158 = vsel %vm266, %v2147, 0.0
    %2159 = vadd.xlane.f32.xlu0 %v2158
    %v2160 = vpop.xlane.xlu0 %2159
    %v2161 = vsel %vm266, %v2148, 0.0
    %2162 = vadd.xlane.f32.xlu0 %v2161
    %v2163 = vpop.xlane.xlu0 %2162
    %v2164 = vsub.f32 %v1910, %v2151
    %v2165 = vsub.f32 %v1913, %v2154
    %v2166 = vsub.f32 %v1916, %v2157
    %v2167 = vsub.f32 %v1919, %v2160
    %v2168 = vsub.f32 %v1922, %v2163
    %v2169 = vmul.f32 %v2164, 1.442695
    %v2170 = vpow.pop %v2169
    %v2171 = vmul.f32 %v2165, 1.442695
    %v2172 = vpow.pop %v2171
    %v2173 = vmul.f32 %v2166, 1.442695
    %v2174 = vpow.pop %v2173
    %v2175 = vmul.f32 %v2167, 1.442695
    %v2176 = vpow.pop %v2175
    %v2177 = vmul.f32 %v2168, 1.442695
    %v2178 = vpow.pop %v2177
    %v2179 = vmul.f32 %v2170, %v772
    %v2180 = vmul.f32 %v2172, %v774
    %v2181 = vmul.f32 %v2174, %v776
    %v2182 = vmul.f32 %v2176, %v778
    %v2183 = vmul.f32 %v2178, %v780
    %2189 = vrot.lane.b32.xlu0 %v2179, 127
    %v2190 = vpop.permute.xlu0 %2189
    %2191 = vrot.lane.b32.xlu0 %v2180, 127
    %v2192 = vpop.permute.xlu0 %2191
    %2193 = vrot.lane.b32.xlu0 %v2181, 127
    %v2194 = vpop.permute.xlu0 %2193
    %2195 = vrot.lane.b32.xlu0 %v2182, 127
    %v2196 = vpop.permute.xlu0 %2195
    %2197 = vrot.lane.b32.xlu0 %v2183, 127
    %v2198 = vpop.permute.xlu0 %2197
    %2204 = vmatpush.msra.mxu0 0.0
    %2205 = vmatpush.msra.mxu0 0.0
    %2206 = vmatpush.msra.mxu0 0.0
    %2207 = vmatpush.msra.mxu0 0.0
    %2208 = vmatpush.msra.mxu0 0.0
    %2209 = vmatpush.msra.mxu0 0.0
    %2210 = vmatpush.msra.mxu0 0.0
    %2211 = vmatpush.msra.mxu0 0.0
    %2212 = vmatpush.msra.mxu0 0.0
    %2213 = vmatpush.msra.mxu0 0.0
    %2214 = vmatpush.msra.mxu0 0.0
    %2215 = vmatpush.msra.mxu0 %v2198
    %2216 = vmatpush.msra.mxu0 %v2196
    %2217 = vmatpush.msra.mxu0 %v2194
    %2218 = vmatpush.msra.mxu0 %v2192
    %2219 = vmatpush.msra.mxu0 %v2190
    %2220 = vmatmul.f32.gmra.mxu0 %v586
    %v2221 = vpop.f32.mrf.mxu0
    %v2222 = vadd.f32 0.0, %v2221
    %2223 = vmatmul.f32.gmra.mxu0 %v589
    %v2224 = vpop.f32.mrf.mxu0
    %v2225 = vadd.f32 0.0, %v2224
    %2226 = vdwg.mxu0
    %2227 = vmatpush.msra.mxu0 0.0
    %2228 = vmatpush.msra.mxu0 0.0
    %2229 = vmatpush.msra.mxu0 0.0
    %2230 = vmatpush.msra.mxu0 0.0
    %2231 = vmatpush.msra.mxu0 0.0
    %2232 = vmatpush.msra.mxu0 0.0
    %2233 = vmatpush.msra.mxu0 0.0
    %2234 = vmatpush.msra.mxu0 0.0
    %2235 = vmatpush.msra.mxu0 0.0
    %2236 = vmatpush.msra.mxu0 0.0
    %2237 = vmatpush.msra.mxu0 0.0
    %2238 = vmatpush.msra.mxu0 0.0
    %2239 = vmatpush.msra.mxu0 0.0
    %2240 = vmatpush.msra.mxu0 0.0
    %2241 = vmatpush.msra.mxu0 %v2225
    %2242 = vmatpush.msra.mxu0 %v2222
    %2243 = vmatmul.f32.gmra.mxu0 %v372
    %v2244 = vpop.f32.mrf.mxu0
    %v2245 = vadd.f32 %v614, %v2244
    %2246 = vmatmul.f32.gmra.mxu0 %v375
    %v2247 = vpop.f32.mrf.mxu0
    %v2248 = vadd.f32 %v615, %v2247
    %2249 = vmatmul.f32.gmra.mxu0 %v378
    %v2250 = vpop.f32.mrf.mxu0
    %v2251 = vadd.f32 %v616, %v2250
    %2252 = vmatmul.f32.gmra.mxu0 %v381
    %v2253 = vpop.f32.mrf.mxu0
    %v2254 = vadd.f32 %v617, %v2253
    %2255 = vmatmul.f32.gmra.mxu0 %v384
    %v2256 = vpop.f32.mrf.mxu0
    %v2257 = vadd.f32 %v618, %v2256
    %2258 = vdwg.mxu0
    %v2259 = vrcp.pop %v2245
    %v2260 = vrcp.pop %v2248
    %v2261 = vrcp.pop %v2251
    %v2262 = vrcp.pop %v2254
    %v2263 = vrcp.pop %v2257
    %2269 = vrot.lane.b32.xlu0 %v2259, 1
    %v2270 = vpop.permute.xlu0 %2269
    %2271 = vrot.lane.b32.xlu0 %v2260, 1
    %v2272 = vpop.permute.xlu0 %2271
    %2273 = vrot.lane.b32.xlu0 %v2261, 1
    %v2274 = vpop.permute.xlu0 %2273
    %2275 = vrot.lane.b32.xlu0 %v2262, 1
    %v2276 = vpop.permute.xlu0 %2275
    %2277 = vrot.lane.b32.xlu0 %v2263, 1
    %v2278 = vpop.permute.xlu0 %2277
    %v2284 = vmul.f32 %v2179, %v2270
    %v2285 = vmul.f32 %v2180, %v2272
    %v2286 = vmul.f32 %v2181, %v2274
    %v2287 = vmul.f32 %v2182, %v2276
    %v2288 = vmul.f32 %v2183, %v2278
    %2290 = vset.pattern.permute.xlu0 1
    %2291 = vperm.xlu0 %2290, %v2284
    %v2292 = vpop.permute.xlu0 %2291
    %2295 = vset.pattern.permute.xlu0 1
    %2296 = vperm.xlu0 %2295, %v2285
    %v2297 = vpop.permute.xlu0 %2296
    %2300 = vset.pattern.permute.xlu0 1
    %2301 = vperm.xlu0 %2300, %v2286
    %v2302 = vpop.permute.xlu0 %2301
    %2305 = vset.pattern.permute.xlu0 1
    %2306 = vperm.xlu0 %2305, %v2287
    %v2307 = vpop.permute.xlu0 %2306
    %2310 = vset.pattern.permute.xlu0 1
    %2311 = vperm.xlu0 %2310, %v2288
    %v2312 = vpop.permute.xlu0 %2311
    %v2314 = vmul.f32 %v2292, %v1761
    %v2315 = vmul.f32 %v2297, %v1764
    %v2316 = vmul.f32 %v2302, %v1767
    %v2317 = vmul.f32 %v2307, %v1770
    %v2318 = vmul.f32 %v2312, %v1773
    %2324 = vrot.lane.b32.xlu0 %v2314, 96
    %v2325 = vpop.permute.xlu0 %2324
    %2326 = vrot.lane.b32.xlu0 %v2315, 96
    %v2327 = vpop.permute.xlu0 %2326
    %2328 = vrot.lane.b32.xlu0 %v2316, 96
    %v2329 = vpop.permute.xlu0 %2328
    %2330 = vrot.lane.b32.xlu0 %v2317, 96
    %v2331 = vpop.permute.xlu0 %2330
    %2332 = vrot.lane.b32.xlu0 %v2318, 96
    %v2333 = vpop.permute.xlu0 %2332
    %2339 = vmatpush.msra.mxu0 0.0
    %2340 = vmatpush.msra.mxu0 0.0
    %2341 = vmatpush.msra.mxu0 0.0
    %2342 = vmatpush.msra.mxu0 0.0
    %2343 = vmatpush.msra.mxu0 0.0
    %2344 = vmatpush.msra.mxu0 0.0
    %2345 = vmatpush.msra.mxu0 0.0
    %2346 = vmatpush.msra.mxu0 0.0
    %2347 = vmatpush.msra.mxu0 0.0
    %2348 = vmatpush.msra.mxu0 0.0
    %2349 = vmatpush.msra.mxu0 0.0
    %2350 = vmatpush.msra.mxu0 %v2333
    %2351 = vmatpush.msra.mxu0 %v2331
    %2352 = vmatpush.msra.mxu0 %v2329
    %2353 = vmatpush.msra.mxu0 %v2327
    %2354 = vmatpush.msra.mxu0 %v2325
    %2355 = vmatmul.f32.gmra.mxu0 %v586
    %v2356 = vpop.f32.mrf.mxu0
    %v2357 = vadd.f32 0.0, %v2356
    %2358 = vmatmul.f32.gmra.mxu0 %v589
    %v2359 = vpop.f32.mrf.mxu0
    %v2360 = vadd.f32 0.0, %v2359
    %2361 = vdwg.mxu0
    %2362 = vmatpush.msra.mxu0 0.0
    %2363 = vmatpush.msra.mxu0 0.0
    %2364 = vmatpush.msra.mxu0 0.0
    %2365 = vmatpush.msra.mxu0 0.0
    %2366 = vmatpush.msra.mxu0 0.0
    %2367 = vmatpush.msra.mxu0 0.0
    %2368 = vmatpush.msra.mxu0 0.0
    %2369 = vmatpush.msra.mxu0 0.0
    %2370 = vmatpush.msra.mxu0 0.0
    %2371 = vmatpush.msra.mxu0 0.0
    %2372 = vmatpush.msra.mxu0 0.0
    %2373 = vmatpush.msra.mxu0 %v2103
    %2374 = vmatpush.msra.mxu0 %v2102
    %2375 = vmatpush.msra.mxu0 %v2101
    %2376 = vmatpush.msra.mxu0 %v2100
    %2377 = vmatpush.msra.mxu0 %v2099
    %2378 = vmatmul.f32.gmra.mxu0 %v586
    %v2379 = vpop.f32.mrf.mxu0
    %v2380 = vadd.f32 %v2357, %v2379
    %2381 = vmatmul.f32.gmra.mxu0 %v589
    %v2382 = vpop.f32.mrf.mxu0
    %v2383 = vadd.f32 %v2360, %v2382
    %2384 = vdwg.mxu0
    %v2385 = vmul.f32 %v2380, 0.5
    %v2386 = vmul.f32 %v2383, 0.5
    %v2387 = vld [vmem:[%s24] sm:$0x1]
    %v2389 = vperm.slane %v2387, 0
    %v2391 = vadd.f32 %v2385, %v2389
    %v2392 = vadd.f32 %v2386, %v2389
    %v2393 = vld [vmem:[%s9] sm:$0x1]
    %v2394 = vunpack.c.l.bf16 %v2393
    %v2396 = vsel %vm266, %v2394, 0
    %2398 = vmatpush.msra.mxu0 0.0
    %2399 = vmatpush.msra.mxu0 0.0
    %2400 = vmatpush.msra.mxu0 0.0
    %2401 = vmatpush.msra.mxu0 0.0
    %2402 = vmatpush.msra.mxu0 0.0
    %2403 = vmatpush.msra.mxu0 0.0
    %2404 = vmatpush.msra.mxu0 0.0
    %2405 = vmatpush.msra.mxu0 0.0
    %2406 = vmatpush.msra.mxu0 0.0
    %2407 = vmatpush.msra.mxu0 0.0
    %2408 = vmatpush.msra.mxu0 0.0
    %2409 = vmatpush.msra.mxu0 0.0
    %2410 = vmatpush.msra.mxu0 0.0
    %2411 = vmatpush.msra.mxu0 0.0
    %2412 = vmatpush.msra.mxu0 %v2392
    %2413 = vmatpush.msra.mxu0 %v2391
    %2414 = vmatmul.f32.gmra.mxu0 %v2396
    %v2415 = vpop.f32.mrf.mxu0
    %v2416 = vadd.f32 0.0, %v2415
    %2417 = vdwg.mxu0
    %vm2418 = vcmask 254976
    %2419 = vst.msk [vmem:[#allocation2] sm:$0x3] %vm2418, %v2416
    // Predicated region
    $region102: #{tpu_custom_call.1} parent=1 // pred_check
      _
    $region103: #{tpu_custom_call.1} parent=1 // pred_check_branch
      %2421 = sbr.rel (0) target = $region105
    $region104: #{tpu_custom_call.1} parent=1 // pred_region
      %2423 = vsyncadd [#allocation3], 0
      %s2425 = sshll.u32 [#allocation2], 4
      %s2426 = int_to_ptr.vmem [resolvable:$true] %s2425
      %s2427 = sshll.u32 %s25, 4
      %s2428 = int_to_ptr.hbm [resolvable:$true] %s2427
      %2430 = dma.vmem_to_hbm [thread:$0]  %s2426, 32, %s2428, [#allocation3]
    $region105: #{tpu_custom_call.1} parent=1 // pred_fallthru
      _
    // Predicated region
    $region106: #{tpu_custom_call.1} parent=1 // pred_check
      _
    $region107: #{tpu_custom_call.1} parent=1 // pred_check_branch
      %2432 = sbr.rel (0) target = $region109
    $region108: #{tpu_custom_call.1} parent=1 // pred_region
      %2434 = dma.done [#allocation3], 32
    $region109: #{tpu_custom_call.1} parent=1 // pred_fallthru
      _
    %2435 = vsyncpa [#allocation3], 1

</llo_original>
